<compile_context>
chip_gen: v7x
topology: tpu7x:2x2x1
jax: 0.10.0
libtpu: 0.0.40
codegen_flags: <defaults>
</compile_context>

<pallas_src>
import jax
import jax.numpy as jnp
from jax import lax
from jax.experimental import pallas as pl
from jax.experimental.pallas import tpu as pltpu

# ---- small, module-consistent hyper-parameters ----
B = 2              # batch (also the LSTM "sequence" length, see note above)
C_IN = 4           # in_channel_num_of_nucleotides
K = 8              # kernel_size_k_mer_motif
SEQ = 16           # seq_len
C2 = 2 * C_IN      # double_features
POOLED = SEQ // 2
LSTM_IN = C2 * POOLED        # 64
H = 32             # lstm_hidden_size
DNN = 128          # dnn_size
BN_EPS = 1e-5

PAD_L = (K - 1) // 2         # PyTorch 'same' for even K: left=3, right=4
LP = SEQ + K - 1             # padded length per batch element


# --------------------------------------------------------------------------
# Single fused kernel
#
# Activation layout inside the kernel: (channels, SEQ*B) with column index
# l*B + b  (length-major, batch-minor), so every im2col tap is ONE contiguous
# lane slab for the whole batch.
# --------------------------------------------------------------------------
def _fused_kernel(x_ref, w0_ref, a0_ref, w1_ref, a1_ref, w2_ref, a2_ref,
                  sel_ref, wxf_ref, wxb_ref, whb_ref, bc_ref,
                  wd_ref, bd_ref, wo_ref, bo_ref,
                  o_ref,
                  pad_ref, unf_ref, xs_ref, lo_ref):
    f32 = jnp.float32
    L, P, T = SEQ, POOLED, B

    # Zero the padded-activation scratch once; pad columns are never written
    # again, so they remain zero for all three conv layers.
    pad_ref[...] = jnp.zeros_like(pad_ref)

    def conv_block(act, ci, w_ref, aff_ref):
        # act: (ci, L*B) activations, column index = l*B + b
        pad_ref[0:ci, PAD_L * B:(PAD_L + L) * B] = act
        for k in range(K):                         # im2col: one slab per tap
            unf_ref[k * ci:(k + 1) * ci, :] = pad_ref[0:ci, k * B:(k + L) * B]
        y = jnp.dot(w_ref[...], unf_ref[0:K * ci, :],
                    preferred_element_type=f32)    # (co, L*B)
        y = jnp.maximum(y + aff_ref[:, 0:1], 0.0)              # conv bias + ReLU
        return y * aff_ref[:, 1:2] + aff_ref[:, 2:3]           # BatchNorm1d (eval)

    h = conv_block(x_ref[...], C_IN, w0_ref, a0_ref)           # (4, 32)
    h = conv_block(h, C_IN, w1_ref, a1_ref)                    # (8, 32)
    h = conv_block(h, C2, w2_ref, a2_ref)                      # (8, 32)

    # MaxPool1d(2,2): even/odd element selection (and re-ordering of columns
    # to t*P + jj) done with a single constant 0/1 matmul, then an elementwise max.
    both = jnp.dot(h, sel_ref[...], preferred_element_type=f32)      # (C2, 2*B*P)
    pooled = jnp.maximum(both[:, 0:B * P], both[:, B * P:2 * B * P])  # (C2, B*P)

    # Flatten (B, C2, P) -> (B, C2*P): x_seq[t, c*P + jj] = pooled[c, t*P + jj]
    for t in range(T):
        for c in range(C2):
            xs_ref[t:t + 1, c * P:(c + 1) * P] = pooled[c:c + 1, t * P:(t + 1) * P]
    xs = xs_ref[...]                                           # (T, LSTM_IN)

    # Bidirectional LSTM over the unbatched 2-D input (time dim = batch dim).
    # Gate columns: [i_f i_b | f_f f_b | g_f g_b | o_f o_b] (each H wide);
    # state layout: [fwd | bwd].  Both directions advance together each step:
    # forward handles time s, backward handles time T-1-s.
    gxf = jnp.dot(xs, wxf_ref[...], preferred_element_type=f32)   # (T, 8H)
    gxb = jnp.dot(xs, wxb_ref[...], preferred_element_type=f32)   # (T, 8H)
    hc = jnp.zeros((1, 2 * H), f32)
    cc = jnp.zeros((1, 2 * H), f32)
    for s in range(T):
        g = (gxf[s:s + 1, :] + gxb[T - 1 - s:T - s, :] + bc_ref[...]
             + jnp.dot(hc, whb_ref[...], preferred_element_type=f32))
        i_g = jax.nn.sigmoid(g[:, 0:2 * H])
        f_g = jax.nn.sigmoid(g[:, 2 * H:4 * H])
        c_g = jnp.tanh(g[:, 4 * H:6 * H])
        o_g = jax.nn.sigmoid(g[:, 6 * H:8 * H])
        cc = f_g * cc + i_g * c_g
        hc = o_g * jnp.tanh(cc)
        lo_ref[s:s + 1, 0:H] = hc[:, 0:H]                      # fwd output, time s
        lo_ref[T - 1 - s:T - s, H:2 * H] = hc[:, H:2 * H]      # bwd output, time T-1-s

    # Linear -> ReLU -> Dropout(p=0.2, eval -> identity) -> Linear
    # (module defines Sigmoid out_act but forward() never applies it)
    d = jnp.maximum(jnp.dot(lo_ref[...], wd_ref[...],
                            preferred_element_type=f32) + bd_ref[...], 0.0)
    y = jnp.dot(d, wo_ref[...], preferred_element_type=f32) + bo_ref[...]
    o_ref[...] = y.astype(o_ref.dtype)


# --------------------------------------------------------------------------
# One-time host-side parameter packing (raw PyTorch-layout params -> kernel-ready)
# --------------------------------------------------------------------------
def prepare_params(p):
    kp = {}

    def conv_pack(w, b, g, be, m, v):
        co = w.shape[0]
        # rows of the im2col buffer are ordered (k, ci) -> flatten weights the same way
        wflat = jnp.transpose(w, (0, 2, 1)).reshape(co, -1)      # (Co, K*Ci)
        scale = g / jnp.sqrt(v + BN_EPS)
        shift = be - m * scale
        aff = jnp.stack([b, scale, shift], axis=1)               # (Co, 3)
        return wflat, aff

    kp['w0'], kp['aff0'] = conv_pack(p['w0'], p['b0'], p['g0'], p['be0'], p['m0'], p['v0'])
    kp['w1'], kp['aff1'] = conv_pack(p['w1'], p['b1'], p['g1'], p['be1'], p['m1'], p['v1'])
    kp['w2'], kp['aff2'] = conv_pack(p['w2'], p['b2'], p['g2'], p['be2'], p['m2'], p['v2'])

    # MaxPool(2,2) + layout-change selection matrix.
    # Conv activation column index = l*B + b ; pooled column index = t*P + jj.
    rows = lax.broadcasted_iota(jnp.int32, (B * SEQ, B * POOLED), 0)
    cols = lax.broadcasted_iota(jnp.int32, (B * SEQ, B * POOLED), 1)
    t = cols // POOLED
    jj = cols % POOLED
    even_src = (2 * jj) * B + t
    odd_src = (2 * jj + 1) * B + t
    kp['sel'] = jnp.concatenate(
        [(rows == even_src).astype(jnp.float32),
         (rows == odd_src).astype(jnp.float32)], axis=1)          # (B*SEQ, 2*B*POOLED)

    # Bidirectional LSTM weights, gate-type-major / direction-minor column layout.
    def interleave(cf, cb):
        parts = []
        for gi in range(4):                                       # PyTorch order i, f, g, o
            parts.append(cf[:, gi * H:(gi + 1) * H])
            parts.append(cb[:, gi * H:(gi + 1) * H])
        return jnp.concatenate(parts, axis=1)

    zx = jnp.zeros((LSTM_IN, 4 * H), jnp.float32)
    zh = jnp.zeros((H, 4 * H), jnp.float32)
    kp['wxf'] = interleave(p['wih_f'].T, zx)                      # (I, 8H): fwd x-gates only
    kp['wxb'] = interleave(zx, p['wih_b'].T)                      # (I, 8H): bwd x-gates only
    kp['whb'] = jnp.concatenate(                                  # (2H, 8H) block-diagonal
        [interleave(p['whh_f'].T, zh), interleave(zh, p['whh_b'].T)], axis=0)
    kp['bcat'] = interleave((p['bih_f'] + p['bhh_f'])[None, :],
                            (p['bih_b'] + p['bhh_b'])[None, :])   # (1, 8H)

    kp['wd'] = p['wd'].T                                          # (2H, DNN)
    kp['bd'] = p['bd'][None, :]                                   # (1, DNN)
    kp['wo'] = p['wo'].T                                          # (DNN, 1)
    kp['bo'] = p['bo'][None, :]                                   # (1, 1)
    return kp


# --------------------------------------------------------------------------
# Full forward pass: one pallas_call, everything VMEM-resident
# --------------------------------------------------------------------------
@jax.jit
def cnn_lstm_forward(x, kp):
    # (B, Ci, L) -> (Ci, L*B), column index = l*B + b
    xt = jnp.transpose(x, (1, 2, 0)).reshape(C_IN, SEQ * B)
    return pl.pallas_call(
        _fused_kernel,
        out_shape=jax.ShapeDtypeStruct((B, 1), jnp.float32),
        scratch_shapes=[
            pltpu.VMEM((C2, LP * B), jnp.float32),      # padded activations (reused per layer)
            pltpu.VMEM((K * C2, SEQ * B), jnp.float32),  # im2col buffer (reused per layer)
            pltpu.VMEM((B, LSTM_IN), jnp.float32),       # flattened LSTM input sequence
            pltpu.VMEM((B, 2 * H), jnp.float32),         # LSTM output
        ],
    )(xt, kp['w0'], kp['aff0'], kp['w1'], kp['aff1'], kp['w2'], kp['aff2'],
      kp['sel'], kp['wxf'], kp['wxb'], kp['whb'], kp['bcat'],
      kp['wd'], kp['bd'], kp['wo'], kp['bo'])


# --------------------------------------------------------------------------
# Parameters (deterministic synthetic init) and pure-JAX reference
# --------------------------------------------------------------------------
def init_params(key):
    ks = iter(jax.random.split(key, 32))

    def nrm(shape, s=0.1):
        return s * jax.random.normal(next(ks), shape, jnp.float32)

    p = {}
    for idx, (ci, co) in enumerate([(C_IN, C_IN), (C_IN, C2), (C2, C2)]):
        p[f'w{idx}'] = nrm((co, ci, K))
        p[f'b{idx}'] = nrm((co,))
        p[f'g{idx}'] = 1.0 + nrm((co,))                       # BN gamma
        p[f'be{idx}'] = nrm((co,))                            # BN beta
        p[f'm{idx}'] = nrm((co,))                             # running mean
        p[f'v{idx}'] = 0.5 + jax.random.uniform(next(ks), (co,), jnp.float32)
    for d in ('f', 'b'):
        p[f'wih_{d}'] = nrm((4 * H, LSTM_IN))
        p[f'whh_{d}'] = nrm((4 * H, H))
        p[f'bih_{d}'] = nrm((4 * H,))
        p[f'bhh_{d}'] = nrm((4 * H,))
    p['wd'] = nrm((DNN, 2 * H))
    p['bd'] = nrm((DNN,))
    p['wo'] = nrm((1, DNN))
    p['bo'] = nrm((1,))
    return p


def ref_forward(x, p):
    def conv_same(h, w, b):
        y = lax.conv_general_dilated(h, w, window_strides=(1,),
                                     padding=[((K - 1) // 2, K // 2)],
                                     dimension_numbers=('NCH', 'OIH', 'NCH'))
        return y + b[None, :, None]

    def bn(h, g, be, m, v):
        return (g[None, :, None] * (h - m[None, :, None])
                / jnp.sqrt(v + BN_EPS)[None, :, None] + be[None, :, None])

    h = bn(jax.nn.relu(conv_same(x, p['w0'], p['b0'])), p['g0'], p['be0'], p['m0'], p['v0'])
    h = bn(jax.nn.relu(conv_same(h, p['w1'], p['b1'])), p['g1'], p['be1'], p['m1'], p['v1'])
    h = bn(jax.nn.relu(conv_same(h, p['w2'], p['b2'])), p['g2'], p['be2'], p['m2'], p['v2'])
    h = jnp.maximum(h[:, :, 0::2], h[:, :, 1::2])
    h = h.reshape(h.shape[0], -1)

    def lstm_dir(xseq, wih, whh, bih, bhh, reverse):
        T = xseq.shape[0]
        hh = jnp.zeros((H,), jnp.float32)
        cc = jnp.zeros((H,), jnp.float32)
        out = [None] * T
        for t in (range(T - 1, -1, -1) if reverse else range(T)):
            g = wih @ xseq[t] + bih + whh @ hh + bhh
            i = jax.nn.sigmoid(g[0:H]); f = jax.nn.sigmoid(g[H:2 * H])
            gg = jnp.tanh(g[2 * H:3 * H]); o = jax.nn.sigmoid(g[3 * H:4 * H])
            cc = f * cc + i * gg
            hh = o * jnp.tanh(cc)
            out[t] = hh
        return jnp.stack(out, axis=0)

    hf = lstm_dir(h, p['wih_f'], p['whh_f'], p['bih_f'], p['bhh_f'], False)
    hb = lstm_dir(h, p['wih_b'], p['whh_b'], p['bih_b'], p['bhh_b'], True)
    h = jnp.concatenate([hf, hb], axis=-1)
    h = jax.nn.relu(h @ p['wd'].T + p['bd'])
    return h @ p['wo'].T + p['bo']


if __name__ == "__main__":
    key = jax.random.PRNGKey(0)
    kx, kpar = jax.random.split(key)
    x = jax.random.normal(kx, (B, C_IN, SEQ), jnp.float32)
    params = init_params(kpar)
    kernel_params = prepare_params(params)     # one-time weight packing

    y = cnn_lstm_forward(x, kernel_params)
    y = jax.block_until_ready(y)

    y_ref = ref_forward(x, params)
    assert y.shape == (B, 1)
    assert float(jnp.max(jnp.abs(y - y_ref))) < 1e-2, "mismatch vs JAX reference"
    print("KERNEL_OK")
</pallas_src>

<mosaic_0001>
module attributes {stable_mosaic.version = 11 : i64} {
  func.func @_fused_kernel(%arg0: memref<4x32xf32, #tpu.memory_space<vmem>>, %arg1: memref<4x32xf32, #tpu.memory_space<vmem>>, %arg2: memref<4x3xf32, #tpu.memory_space<vmem>>, %arg3: memref<8x32xf32, #tpu.memory_space<vmem>>, %arg4: memref<8x3xf32, #tpu.memory_space<vmem>>, %arg5: memref<8x64xf32, #tpu.memory_space<vmem>>, %arg6: memref<8x3xf32, #tpu.memory_space<vmem>>, %arg7: memref<32x32xf32, #tpu.memory_space<vmem>>, %arg8: memref<64x256xf32, #tpu.memory_space<vmem>>, %arg9: memref<64x256xf32, #tpu.memory_space<vmem>>, %arg10: memref<64x256xf32, #tpu.memory_space<vmem>>, %arg11: memref<1x256xf32, #tpu.memory_space<vmem>>, %arg12: memref<64x128xf32, #tpu.memory_space<vmem>>, %arg13: memref<1x128xf32, #tpu.memory_space<vmem>>, %arg14: memref<128x1xf32, #tpu.memory_space<vmem>>, %arg15: memref<1x1xf32, #tpu.memory_space<vmem>>, %arg16: memref<2x1xf32, #tpu.memory_space<vmem>>, %arg17: memref<8x46xf32, #tpu.memory_space<vmem>>, %arg18: memref<64x32xf32, #tpu.memory_space<vmem>>, %arg19: memref<2x64xf32, #tpu.memory_space<vmem>>, %arg20: memref<2x64xf32, #tpu.memory_space<vmem>>) attributes {dimension_semantics = [], scalar_prefetch = 0 : i64, scratch_operands = 4 : i64, tpu.core_type = #tpu.core_type<tc>} {
    %cst = arith.constant 0.000000e+00 : f32
    %0 = vector.broadcast %cst : f32 to vector<8x46xf32>
    %c0 = arith.constant 0 : index
    %c0_0 = arith.constant 0 : index
    %1 = vector.load %arg17[%c0, %c0_0] : memref<8x46xf32, #tpu.memory_space<vmem>>, vector<8x46xf32>
    tpu.vector_store %arg17[%c0, %c0_0], %0 {strides = array<i32>} : memref<8x46xf32, #tpu.memory_space<vmem>>, vector<8x46xf32>,
    %c0_1 = arith.constant 0 : index
    %c0_2 = arith.constant 0 : index
    %2 = vector.load %arg0[%c0_1, %c0_2] : memref<4x32xf32, #tpu.memory_space<vmem>>, vector<4x32xf32>
    %c0_3 = arith.constant 0 : index
    %c6 = arith.constant 6 : index
    %3 = vector.load %arg17[%c0_3, %c6] : memref<8x46xf32, #tpu.memory_space<vmem>>, vector<4x32xf32>
    tpu.vector_store %arg17[%c0_3, %c6], %2 {strides = array<i32>} : memref<8x46xf32, #tpu.memory_space<vmem>>, vector<4x32xf32>,
    %c0_4 = arith.constant 0 : index
    %c0_5 = arith.constant 0 : index
    %4 = vector.load %arg17[%c0_4, %c0_5] : memref<8x46xf32, #tpu.memory_space<vmem>>, vector<4x32xf32>
    %c0_6 = arith.constant 0 : index
    %c0_7 = arith.constant 0 : index
    %5 = vector.load %arg18[%c0_6, %c0_7] : memref<64x32xf32, #tpu.memory_space<vmem>>, vector<4x32xf32>
    tpu.vector_store %arg18[%c0_6, %c0_7], %4 {strides = array<i32>} : memref<64x32xf32, #tpu.memory_space<vmem>>, vector<4x32xf32>,
    %c0_8 = arith.constant 0 : index
    %c2 = arith.constant 2 : index
    %6 = vector.load %arg17[%c0_8, %c2] : memref<8x46xf32, #tpu.memory_space<vmem>>, vector<4x32xf32>
    %c4 = arith.constant 4 : index
    %c0_9 = arith.constant 0 : index
    %7 = vector.load %arg18[%c4, %c0_9] : memref<64x32xf32, #tpu.memory_space<vmem>>, vector<4x32xf32>
    tpu.vector_store %arg18[%c4, %c0_9], %6 {strides = array<i32>} : memref<64x32xf32, #tpu.memory_space<vmem>>, vector<4x32xf32>,
    %c0_10 = arith.constant 0 : index
    %c4_11 = arith.constant 4 : index
    %8 = vector.load %arg17[%c0_10, %c4_11] : memref<8x46xf32, #tpu.memory_space<vmem>>, vector<4x32xf32>
    %c8 = arith.constant 8 : index
    %c0_12 = arith.constant 0 : index
    %9 = vector.load %arg18[%c8, %c0_12] : memref<64x32xf32, #tpu.memory_space<vmem>>, vector<4x32xf32>
    tpu.vector_store %arg18[%c8, %c0_12], %8 {strides = array<i32>} : memref<64x32xf32, #tpu.memory_space<vmem>>, vector<4x32xf32>,
    %c0_13 = arith.constant 0 : index
    %c6_14 = arith.constant 6 : index
    %10 = vector.load %arg17[%c0_13, %c6_14] : memref<8x46xf32, #tpu.memory_space<vmem>>, vector<4x32xf32>
    %c12 = arith.constant 12 : index
    %c0_15 = arith.constant 0 : index
    %11 = vector.load %arg18[%c12, %c0_15] : memref<64x32xf32, #tpu.memory_space<vmem>>, vector<4x32xf32>
    tpu.vector_store %arg18[%c12, %c0_15], %10 {strides = array<i32>} : memref<64x32xf32, #tpu.memory_space<vmem>>, vector<4x32xf32>,
    %c0_16 = arith.constant 0 : index
    %c8_17 = arith.constant 8 : index
    %12 = vector.load %arg17[%c0_16, %c8_17] : memref<8x46xf32, #tpu.memory_space<vmem>>, vector<4x32xf32>
    %c16 = arith.constant 16 : index
    %c0_18 = arith.constant 0 : index
    %13 = vector.load %arg18[%c16, %c0_18] : memref<64x32xf32, #tpu.memory_space<vmem>>, vector<4x32xf32>
    tpu.vector_store %arg18[%c16, %c0_18], %12 {strides = array<i32>} : memref<64x32xf32, #tpu.memory_space<vmem>>, vector<4x32xf32>,
    %c0_19 = arith.constant 0 : index
    %c10 = arith.constant 10 : index
    %14 = vector.load %arg17[%c0_19, %c10] : memref<8x46xf32, #tpu.memory_space<vmem>>, vector<4x32xf32>
    %c20 = arith.constant 20 : index
    %c0_20 = arith.constant 0 : index
    %15 = vector.load %arg18[%c20, %c0_20] : memref<64x32xf32, #tpu.memory_space<vmem>>, vector<4x32xf32>
    tpu.vector_store %arg18[%c20, %c0_20], %14 {strides = array<i32>} : memref<64x32xf32, #tpu.memory_space<vmem>>, vector<4x32xf32>,
    %c0_21 = arith.constant 0 : index
    %c12_22 = arith.constant 12 : index
    %16 = vector.load %arg17[%c0_21, %c12_22] : memref<8x46xf32, #tpu.memory_space<vmem>>, vector<4x32xf32>
    %c24 = arith.constant 24 : index
    %c0_23 = arith.constant 0 : index
    %17 = vector.load %arg18[%c24, %c0_23] : memref<64x32xf32, #tpu.memory_space<vmem>>, vector<4x32xf32>
    tpu.vector_store %arg18[%c24, %c0_23], %16 {strides = array<i32>} : memref<64x32xf32, #tpu.memory_space<vmem>>, vector<4x32xf32>,
    %c0_24 = arith.constant 0 : index
    %c14 = arith.constant 14 : index
    %18 = vector.load %arg17[%c0_24, %c14] : memref<8x46xf32, #tpu.memory_space<vmem>>, vector<4x32xf32>
    %c28 = arith.constant 28 : index
    %c0_25 = arith.constant 0 : index
    %19 = vector.load %arg18[%c28, %c0_25] : memref<64x32xf32, #tpu.memory_space<vmem>>, vector<4x32xf32>
    tpu.vector_store %arg18[%c28, %c0_25], %18 {strides = array<i32>} : memref<64x32xf32, #tpu.memory_space<vmem>>, vector<4x32xf32>,
    %c0_26 = arith.constant 0 : index
    %c0_27 = arith.constant 0 : index
    %20 = vector.load %arg1[%c0_26, %c0_27] : memref<4x32xf32, #tpu.memory_space<vmem>>, vector<4x32xf32>
    %c0_28 = arith.constant 0 : index
    %c0_29 = arith.constant 0 : index
    %21 = vector.load %arg18[%c0_28, %c0_29] : memref<64x32xf32, #tpu.memory_space<vmem>>, vector<32x32xf32>
    %cst_30 = arith.constant dense<0.000000e+00> : vector<4x32xf32>
    %22 = tpu.matmul %20, %21, %cst_30 {dimension_numbers = #tpu.dot_dimension_numbers<[1], [0], [0], [1], [0, 0, 1, 1], [], []>} : vector<4x32xf32>, vector<32x32xf32>, vector<4x32xf32> -> vector<4x32xf32>
    %c0_31 = arith.constant 0 : index
    %c0_32 = arith.constant 0 : index
    %23 = vector.load %arg2[%c0_31, %c0_32] : memref<4x3xf32, #tpu.memory_space<vmem>>, vector<4x1xf32>
    %24 = vector.broadcast %23 : vector<4x1xf32> to vector<4x32xf32>
    %25 = arith.addf %22, %24 : vector<4x32xf32>
    %cst_33 = arith.constant 0.000000e+00 : f32
    %26 = vector.broadcast %cst_33 : f32 to vector<4x32xf32>
    %27 = arith.maximumf %25, %26 : vector<4x32xf32>
    %c0_34 = arith.constant 0 : index
    %c1 = arith.constant 1 : index
    %28 = vector.load %arg2[%c0_34, %c1] : memref<4x3xf32, #tpu.memory_space<vmem>>, vector<4x1xf32>
    %29 = vector.broadcast %28 : vector<4x1xf32> to vector<4x32xf32>
    %30 = arith.mulf %27, %29 : vector<4x32xf32>
    %c0_35 = arith.constant 0 : index
    %c2_36 = arith.constant 2 : index
    %31 = vector.load %arg2[%c0_35, %c2_36] : memref<4x3xf32, #tpu.memory_space<vmem>>, vector<4x1xf32>
    %32 = vector.broadcast %31 : vector<4x1xf32> to vector<4x32xf32>
    %33 = arith.addf %30, %32 : vector<4x32xf32>
    %c0_37 = arith.constant 0 : index
    %c6_38 = arith.constant 6 : index
    %34 = vector.load %arg17[%c0_37, %c6_38] : memref<8x46xf32, #tpu.memory_space<vmem>>, vector<4x32xf32>
    tpu.vector_store %arg17[%c0_37, %c6_38], %33 {strides = array<i32>} : memref<8x46xf32, #tpu.memory_space<vmem>>, vector<4x32xf32>,
    %c0_39 = arith.constant 0 : index
    %c0_40 = arith.constant 0 : index
    %35 = vector.load %arg17[%c0_39, %c0_40] : memref<8x46xf32, #tpu.memory_space<vmem>>, vector<4x32xf32>
    %c0_41 = arith.constant 0 : index
    %c0_42 = arith.constant 0 : index
    %36 = vector.load %arg18[%c0_41, %c0_42] : memref<64x32xf32, #tpu.memory_space<vmem>>, vector<4x32xf32>
    tpu.vector_store %arg18[%c0_41, %c0_42], %35 {strides = array<i32>} : memref<64x32xf32, #tpu.memory_space<vmem>>, vector<4x32xf32>,
    %c0_43 = arith.constant 0 : index
    %c2_44 = arith.constant 2 : index
    %37 = vector.load %arg17[%c0_43, %c2_44] : memref<8x46xf32, #tpu.memory_space<vmem>>, vector<4x32xf32>
    %c4_45 = arith.constant 4 : index
    %c0_46 = arith.constant 0 : index
    %38 = vector.load %arg18[%c4_45, %c0_46] : memref<64x32xf32, #tpu.memory_space<vmem>>, vector<4x32xf32>
    tpu.vector_store %arg18[%c4_45, %c0_46], %37 {strides = array<i32>} : memref<64x32xf32, #tpu.memory_space<vmem>>, vector<4x32xf32>,
    %c0_47 = arith.constant 0 : index
    %c4_48 = arith.constant 4 : index
    %39 = vector.load %arg17[%c0_47, %c4_48] : memref<8x46xf32, #tpu.memory_space<vmem>>, vector<4x32xf32>
    %c8_49 = arith.constant 8 : index
    %c0_50 = arith.constant 0 : index
    %40 = vector.load %arg18[%c8_49, %c0_50] : memref<64x32xf32, #tpu.memory_space<vmem>>, vector<4x32xf32>
    tpu.vector_store %arg18[%c8_49, %c0_50], %39 {strides = array<i32>} : memref<64x32xf32, #tpu.memory_space<vmem>>, vector<4x32xf32>,
    %c0_51 = arith.constant 0 : index
    %c6_52 = arith.constant 6 : index
    %41 = vector.load %arg17[%c0_51, %c6_52] : memref<8x46xf32, #tpu.memory_space<vmem>>, vector<4x32xf32>
    %c12_53 = arith.constant 12 : index
    %c0_54 = arith.constant 0 : index
    %42 = vector.load %arg18[%c12_53, %c0_54] : memref<64x32xf32, #tpu.memory_space<vmem>>, vector<4x32xf32>
    tpu.vector_store %arg18[%c12_53, %c0_54], %41 {strides = array<i32>} : memref<64x32xf32, #tpu.memory_space<vmem>>, vector<4x32xf32>,
    %c0_55 = arith.constant 0 : index
    %c8_56 = arith.constant 8 : index
    %43 = vector.load %arg17[%c0_55, %c8_56] : memref<8x46xf32, #tpu.memory_space<vmem>>, vector<4x32xf32>
    %c16_57 = arith.constant 16 : index
    %c0_58 = arith.constant 0 : index
    %44 = vector.load %arg18[%c16_57, %c0_58] : memref<64x32xf32, #tpu.memory_space<vmem>>, vector<4x32xf32>
    tpu.vector_store %arg18[%c16_57, %c0_58], %43 {strides = array<i32>} : memref<64x32xf32, #tpu.memory_space<vmem>>, vector<4x32xf32>,
    %c0_59 = arith.constant 0 : index
    %c10_60 = arith.constant 10 : index
    %45 = vector.load %arg17[%c0_59, %c10_60] : memref<8x46xf32, #tpu.memory_space<vmem>>, vector<4x32xf32>
    %c20_61 = arith.constant 20 : index
    %c0_62 = arith.constant 0 : index
    %46 = vector.load %arg18[%c20_61, %c0_62] : memref<64x32xf32, #tpu.memory_space<vmem>>, vector<4x32xf32>
    tpu.vector_store %arg18[%c20_61, %c0_62], %45 {strides = array<i32>} : memref<64x32xf32, #tpu.memory_space<vmem>>, vector<4x32xf32>,
    %c0_63 = arith.constant 0 : index
    %c12_64 = arith.constant 12 : index
    %47 = vector.load %arg17[%c0_63, %c12_64] : memref<8x46xf32, #tpu.memory_space<vmem>>, vector<4x32xf32>
    %c24_65 = arith.constant 24 : index
    %c0_66 = arith.constant 0 : index
    %48 = vector.load %arg18[%c24_65, %c0_66] : memref<64x32xf32, #tpu.memory_space<vmem>>, vector<4x32xf32>
    tpu.vector_store %arg18[%c24_65, %c0_66], %47 {strides = array<i32>} : memref<64x32xf32, #tpu.memory_space<vmem>>, vector<4x32xf32>,
    %c0_67 = arith.constant 0 : index
    %c14_68 = arith.constant 14 : index
    %49 = vector.load %arg17[%c0_67, %c14_68] : memref<8x46xf32, #tpu.memory_space<vmem>>, vector<4x32xf32>
    %c28_69 = arith.constant 28 : index
    %c0_70 = arith.constant 0 : index
    %50 = vector.load %arg18[%c28_69, %c0_70] : memref<64x32xf32, #tpu.memory_space<vmem>>, vector<4x32xf32>
    tpu.vector_store %arg18[%c28_69, %c0_70], %49 {strides = array<i32>} : memref<64x32xf32, #tpu.memory_space<vmem>>, vector<4x32xf32>,
    %c0_71 = arith.constant 0 : index
    %c0_72 = arith.constant 0 : index
    %51 = vector.load %arg3[%c0_71, %c0_72] : memref<8x32xf32, #tpu.memory_space<vmem>>, vector<8x32xf32>
    %c0_73 = arith.constant 0 : index
    %c0_74 = arith.constant 0 : index
    %52 = vector.load %arg18[%c0_73, %c0_74] : memref<64x32xf32, #tpu.memory_space<vmem>>, vector<32x32xf32>
    %cst_75 = arith.constant dense<0.000000e+00> : vector<8x32xf32>
    %53 = tpu.matmul %51, %52, %cst_75 {dimension_numbers = #tpu.dot_dimension_numbers<[1], [0], [0], [1], [0, 0, 1, 1], [], []>} : vector<8x32xf32>, vector<32x32xf32>, vector<8x32xf32> -> vector<8x32xf32>
    %c0_76 = arith.constant 0 : index
    %c0_77 = arith.constant 0 : index
    %54 = vector.load %arg4[%c0_76, %c0_77] : memref<8x3xf32, #tpu.memory_space<vmem>>, vector<8x1xf32>
    %55 = vector.broadcast %54 : vector<8x1xf32> to vector<8x32xf32>
    %56 = arith.addf %53, %55 : vector<8x32xf32>
    %cst_78 = arith.constant 0.000000e+00 : f32
    %57 = vector.broadcast %cst_78 : f32 to vector<8x32xf32>
    %58 = arith.maximumf %56, %57 : vector<8x32xf32>
    %c0_79 = arith.constant 0 : index
    %c1_80 = arith.constant 1 : index
    %59 = vector.load %arg4[%c0_79, %c1_80] : memref<8x3xf32, #tpu.memory_space<vmem>>, vector<8x1xf32>
    %60 = vector.broadcast %59 : vector<8x1xf32> to vector<8x32xf32>
    %61 = arith.mulf %58, %60 : vector<8x32xf32>
    %c0_81 = arith.constant 0 : index
    %c2_82 = arith.constant 2 : index
    %62 = vector.load %arg4[%c0_81, %c2_82] : memref<8x3xf32, #tpu.memory_space<vmem>>, vector<8x1xf32>
    %63 = vector.broadcast %62 : vector<8x1xf32> to vector<8x32xf32>
    %64 = arith.addf %61, %63 : vector<8x32xf32>
    %c0_83 = arith.constant 0 : index
    %c6_84 = arith.constant 6 : index
    %65 = vector.load %arg17[%c0_83, %c6_84] : memref<8x46xf32, #tpu.memory_space<vmem>>, vector<8x32xf32>
    tpu.vector_store %arg17[%c0_83, %c6_84], %64 {strides = array<i32>} : memref<8x46xf32, #tpu.memory_space<vmem>>, vector<8x32xf32>,
    %c0_85 = arith.constant 0 : index
    %c0_86 = arith.constant 0 : index
    %66 = vector.load %arg17[%c0_85, %c0_86] : memref<8x46xf32, #tpu.memory_space<vmem>>, vector<8x32xf32>
    %c0_87 = arith.constant 0 : index
    %c0_88 = arith.constant 0 : index
    %67 = vector.load %arg18[%c0_87, %c0_88] : memref<64x32xf32, #tpu.memory_space<vmem>>, vector<8x32xf32>
    tpu.vector_store %arg18[%c0_87, %c0_88], %66 {strides = array<i32>} : memref<64x32xf32, #tpu.memory_space<vmem>>, vector<8x32xf32>,
    %c0_89 = arith.constant 0 : index
    %c2_90 = arith.constant 2 : index
    %68 = vector.load %arg17[%c0_89, %c2_90] : memref<8x46xf32, #tpu.memory_space<vmem>>, vector<8x32xf32>
    %c8_91 = arith.constant 8 : index
    %c0_92 = arith.constant 0 : index
    %69 = vector.load %arg18[%c8_91, %c0_92] : memref<64x32xf32, #tpu.memory_space<vmem>>, vector<8x32xf32>
    tpu.vector_store %arg18[%c8_91, %c0_92], %68 {strides = array<i32>} : memref<64x32xf32, #tpu.memory_space<vmem>>, vector<8x32xf32>,
    %c0_93 = arith.constant 0 : index
    %c4_94 = arith.constant 4 : index
    %70 = vector.load %arg17[%c0_93, %c4_94] : memref<8x46xf32, #tpu.memory_space<vmem>>, vector<8x32xf32>
    %c16_95 = arith.constant 16 : index
    %c0_96 = arith.constant 0 : index
    %71 = vector.load %arg18[%c16_95, %c0_96] : memref<64x32xf32, #tpu.memory_space<vmem>>, vector<8x32xf32>
    tpu.vector_store %arg18[%c16_95, %c0_96], %70 {strides = array<i32>} : memref<64x32xf32, #tpu.memory_space<vmem>>, vector<8x32xf32>,
    %c0_97 = arith.constant 0 : index
    %c6_98 = arith.constant 6 : index
    %72 = vector.load %arg17[%c0_97, %c6_98] : memref<8x46xf32, #tpu.memory_space<vmem>>, vector<8x32xf32>
    %c24_99 = arith.constant 24 : index
    %c0_100 = arith.constant 0 : index
    %73 = vector.load %arg18[%c24_99, %c0_100] : memref<64x32xf32, #tpu.memory_space<vmem>>, vector<8x32xf32>
    tpu.vector_store %arg18[%c24_99, %c0_100], %72 {strides = array<i32>} : memref<64x32xf32, #tpu.memory_space<vmem>>, vector<8x32xf32>,
    %c0_101 = arith.constant 0 : index
    %c8_102 = arith.constant 8 : index
    %74 = vector.load %arg17[%c0_101, %c8_102] : memref<8x46xf32, #tpu.memory_space<vmem>>, vector<8x32xf32>
    %c32 = arith.constant 32 : index
    %c0_103 = arith.constant 0 : index
    %75 = vector.load %arg18[%c32, %c0_103] : memref<64x32xf32, #tpu.memory_space<vmem>>, vector<8x32xf32>
    tpu.vector_store %arg18[%c32, %c0_103], %74 {strides = array<i32>} : memref<64x32xf32, #tpu.memory_space<vmem>>, vector<8x32xf32>,
    %c0_104 = arith.constant 0 : index
    %c10_105 = arith.constant 10 : index
    %76 = vector.load %arg17[%c0_104, %c10_105] : memref<8x46xf32, #tpu.memory_space<vmem>>, vector<8x32xf32>
    %c40 = arith.constant 40 : index
    %c0_106 = arith.constant 0 : index
    %77 = vector.load %arg18[%c40, %c0_106] : memref<64x32xf32, #tpu.memory_space<vmem>>, vector<8x32xf32>
    tpu.vector_store %arg18[%c40, %c0_106], %76 {strides = array<i32>} : memref<64x32xf32, #tpu.memory_space<vmem>>, vector<8x32xf32>,
    %c0_107 = arith.constant 0 : index
    %c12_108 = arith.constant 12 : index
    %78 = vector.load %arg17[%c0_107, %c12_108] : memref<8x46xf32, #tpu.memory_space<vmem>>, vector<8x32xf32>
    %c48 = arith.constant 48 : index
    %c0_109 = arith.constant 0 : index
    %79 = vector.load %arg18[%c48, %c0_109] : memref<64x32xf32, #tpu.memory_space<vmem>>, vector<8x32xf32>
    tpu.vector_store %arg18[%c48, %c0_109], %78 {strides = array<i32>} : memref<64x32xf32, #tpu.memory_space<vmem>>, vector<8x32xf32>,
    %c0_110 = arith.constant 0 : index
    %c14_111 = arith.constant 14 : index
    %80 = vector.load %arg17[%c0_110, %c14_111] : memref<8x46xf32, #tpu.memory_space<vmem>>, vector<8x32xf32>
    %c56 = arith.constant 56 : index
    %c0_112 = arith.constant 0 : index
    %81 = vector.load %arg18[%c56, %c0_112] : memref<64x32xf32, #tpu.memory_space<vmem>>, vector<8x32xf32>
    tpu.vector_store %arg18[%c56, %c0_112], %80 {strides = array<i32>} : memref<64x32xf32, #tpu.memory_space<vmem>>, vector<8x32xf32>,
    %c0_113 = arith.constant 0 : index
    %c0_114 = arith.constant 0 : index
    %82 = vector.load %arg5[%c0_113, %c0_114] : memref<8x64xf32, #tpu.memory_space<vmem>>, vector<8x64xf32>
    %c0_115 = arith.constant 0 : index
    %c0_116 = arith.constant 0 : index
    %83 = vector.load %arg18[%c0_115, %c0_116] : memref<64x32xf32, #tpu.memory_space<vmem>>, vector<64x32xf32>
    %cst_117 = arith.constant dense<0.000000e+00> : vector<8x32xf32>
    %84 = tpu.matmul %82, %83, %cst_117 {dimension_numbers = #tpu.dot_dimension_numbers<[1], [0], [0], [1], [0, 0, 1, 1], [], []>} : vector<8x64xf32>, vector<64x32xf32>, vector<8x32xf32> -> vector<8x32xf32>
    %c0_118 = arith.constant 0 : index
    %c0_119 = arith.constant 0 : index
    %85 = vector.load %arg6[%c0_118, %c0_119] : memref<8x3xf32, #tpu.memory_space<vmem>>, vector<8x1xf32>
    %86 = vector.broadcast %85 : vector<8x1xf32> to vector<8x32xf32>
    %87 = arith.addf %84, %86 : vector<8x32xf32>
    %cst_120 = arith.constant 0.000000e+00 : f32
    %88 = vector.broadcast %cst_120 : f32 to vector<8x32xf32>
    %89 = arith.maximumf %87, %88 : vector<8x32xf32>
    %c0_121 = arith.constant 0 : index
    %c1_122 = arith.constant 1 : index
    %90 = vector.load %arg6[%c0_121, %c1_122] : memref<8x3xf32, #tpu.memory_space<vmem>>, vector<8x1xf32>
    %91 = vector.broadcast %90 : vector<8x1xf32> to vector<8x32xf32>
    %92 = arith.mulf %89, %91 : vector<8x32xf32>
    %c0_123 = arith.constant 0 : index
    %c2_124 = arith.constant 2 : index
    %93 = vector.load %arg6[%c0_123, %c2_124] : memref<8x3xf32, #tpu.memory_space<vmem>>, vector<8x1xf32>
    %94 = vector.broadcast %93 : vector<8x1xf32> to vector<8x32xf32>
    %95 = arith.addf %92, %94 : vector<8x32xf32>
    %c0_125 = arith.constant 0 : index
    %c0_126 = arith.constant 0 : index
    %96 = vector.load %arg7[%c0_125, %c0_126] : memref<32x32xf32, #tpu.memory_space<vmem>>, vector<32x32xf32>
    %cst_127 = arith.constant dense<0.000000e+00> : vector<8x32xf32>
    %97 = tpu.matmul %95, %96, %cst_127 {dimension_numbers = #tpu.dot_dimension_numbers<[1], [0], [0], [1], [0, 0, 1, 1], [], []>} : vector<8x32xf32>, vector<32x32xf32>, vector<8x32xf32> -> vector<8x32xf32>
    %98 = vector.extract_strided_slice %97 {offsets = [0, 0], sizes = [8, 16], strides = [1, 1]} : vector<8x32xf32> to vector<8x16xf32>
    %99 = vector.extract_strided_slice %97 {offsets = [0, 16], sizes = [8, 16], strides = [1, 1]} : vector<8x32xf32> to vector<8x16xf32>
    %100 = arith.maximumf %98, %99 : vector<8x16xf32>
    %101 = vector.extract_strided_slice %100 {offsets = [0, 0], sizes = [1, 8], strides = [1, 1]} : vector<8x16xf32> to vector<1x8xf32>
    %c0_128 = arith.constant 0 : index
    %c0_129 = arith.constant 0 : index
    %102 = vector.load %arg19[%c0_128, %c0_129] : memref<2x64xf32, #tpu.memory_space<vmem>>, vector<1x8xf32>
    tpu.vector_store %arg19[%c0_128, %c0_129], %101 {strides = array<i32>} : memref<2x64xf32, #tpu.memory_space<vmem>>, vector<1x8xf32>,
    %103 = vector.extract_strided_slice %100 {offsets = [1, 0], sizes = [1, 8], strides = [1, 1]} : vector<8x16xf32> to vector<1x8xf32>
    %c0_130 = arith.constant 0 : index
    %c8_131 = arith.constant 8 : index
    %104 = vector.load %arg19[%c0_130, %c8_131] : memref<2x64xf32, #tpu.memory_space<vmem>>, vector<1x8xf32>
    tpu.vector_store %arg19[%c0_130, %c8_131], %103 {strides = array<i32>} : memref<2x64xf32, #tpu.memory_space<vmem>>, vector<1x8xf32>,
    %105 = vector.extract_strided_slice %100 {offsets = [2, 0], sizes = [1, 8], strides = [1, 1]} : vector<8x16xf32> to vector<1x8xf32>
    %c0_132 = arith.constant 0 : index
    %c16_133 = arith.constant 16 : index
    %106 = vector.load %arg19[%c0_132, %c16_133] : memref<2x64xf32, #tpu.memory_space<vmem>>, vector<1x8xf32>
    tpu.vector_store %arg19[%c0_132, %c16_133], %105 {strides = array<i32>} : memref<2x64xf32, #tpu.memory_space<vmem>>, vector<1x8xf32>,
    %107 = vector.extract_strided_slice %100 {offsets = [3, 0], sizes = [1, 8], strides = [1, 1]} : vector<8x16xf32> to vector<1x8xf32>
    %c0_134 = arith.constant 0 : index
    %c24_135 = arith.constant 24 : index
    %108 = vector.load %arg19[%c0_134, %c24_135] : memref<2x64xf32, #tpu.memory_space<vmem>>, vector<1x8xf32>
    tpu.vector_store %arg19[%c0_134, %c24_135], %107 {strides = array<i32>} : memref<2x64xf32, #tpu.memory_space<vmem>>, vector<1x8xf32>,
    %109 = vector.extract_strided_slice %100 {offsets = [4, 0], sizes = [1, 8], strides = [1, 1]} : vector<8x16xf32> to vector<1x8xf32>
    %c0_136 = arith.constant 0 : index
    %c32_137 = arith.constant 32 : index
    %110 = vector.load %arg19[%c0_136, %c32_137] : memref<2x64xf32, #tpu.memory_space<vmem>>, vector<1x8xf32>
    tpu.vector_store %arg19[%c0_136, %c32_137], %109 {strides = array<i32>} : memref<2x64xf32, #tpu.memory_space<vmem>>, vector<1x8xf32>,
    %111 = vector.extract_strided_slice %100 {offsets = [5, 0], sizes = [1, 8], strides = [1, 1]} : vector<8x16xf32> to vector<1x8xf32>
    %c0_138 = arith.constant 0 : index
    %c40_139 = arith.constant 40 : index
    %112 = vector.load %arg19[%c0_138, %c40_139] : memref<2x64xf32, #tpu.memory_space<vmem>>, vector<1x8xf32>
    tpu.vector_store %arg19[%c0_138, %c40_139], %111 {strides = array<i32>} : memref<2x64xf32, #tpu.memory_space<vmem>>, vector<1x8xf32>,
    %113 = vector.extract_strided_slice %100 {offsets = [6, 0], sizes = [1, 8], strides = [1, 1]} : vector<8x16xf32> to vector<1x8xf32>
    %c0_140 = arith.constant 0 : index
    %c48_141 = arith.constant 48 : index
    %114 = vector.load %arg19[%c0_140, %c48_141] : memref<2x64xf32, #tpu.memory_space<vmem>>, vector<1x8xf32>
    tpu.vector_store %arg19[%c0_140, %c48_141], %113 {strides = array<i32>} : memref<2x64xf32, #tpu.memory_space<vmem>>, vector<1x8xf32>,
    %115 = vector.extract_strided_slice %100 {offsets = [7, 0], sizes = [1, 8], strides = [1, 1]} : vector<8x16xf32> to vector<1x8xf32>
    %c0_142 = arith.constant 0 : index
    %c56_143 = arith.constant 56 : index
    %116 = vector.load %arg19[%c0_142, %c56_143] : memref<2x64xf32, #tpu.memory_space<vmem>>, vector<1x8xf32>
    tpu.vector_store %arg19[%c0_142, %c56_143], %115 {strides = array<i32>} : memref<2x64xf32, #tpu.memory_space<vmem>>, vector<1x8xf32>,
    %117 = vector.extract_strided_slice %100 {offsets = [0, 8], sizes = [1, 8], strides = [1, 1]} : vector<8x16xf32> to vector<1x8xf32>
    %c1_144 = arith.constant 1 : index
    %c0_145 = arith.constant 0 : index
    %118 = vector.load %arg19[%c1_144, %c0_145] : memref<2x64xf32, #tpu.memory_space<vmem>>, vector<1x8xf32>
    tpu.vector_store %arg19[%c1_144, %c0_145], %117 {strides = array<i32>} : memref<2x64xf32, #tpu.memory_space<vmem>>, vector<1x8xf32>,
    %119 = vector.extract_strided_slice %100 {offsets = [1, 8], sizes = [1, 8], strides = [1, 1]} : vector<8x16xf32> to vector<1x8xf32>
    %c1_146 = arith.constant 1 : index
    %c8_147 = arith.constant 8 : index
    %120 = vector.load %arg19[%c1_146, %c8_147] : memref<2x64xf32, #tpu.memory_space<vmem>>, vector<1x8xf32>
    tpu.vector_store %arg19[%c1_146, %c8_147], %119 {strides = array<i32>} : memref<2x64xf32, #tpu.memory_space<vmem>>, vector<1x8xf32>,
    %121 = vector.extract_strided_slice %100 {offsets = [2, 8], sizes = [1, 8], strides = [1, 1]} : vector<8x16xf32> to vector<1x8xf32>
    %c1_148 = arith.constant 1 : index
    %c16_149 = arith.constant 16 : index
    %122 = vector.load %arg19[%c1_148, %c16_149] : memref<2x64xf32, #tpu.memory_space<vmem>>, vector<1x8xf32>
    tpu.vector_store %arg19[%c1_148, %c16_149], %121 {strides = array<i32>} : memref<2x64xf32, #tpu.memory_space<vmem>>, vector<1x8xf32>,
    %123 = vector.extract_strided_slice %100 {offsets = [3, 8], sizes = [1, 8], strides = [1, 1]} : vector<8x16xf32> to vector<1x8xf32>
    %c1_150 = arith.constant 1 : index
    %c24_151 = arith.constant 24 : index
    %124 = vector.load %arg19[%c1_150, %c24_151] : memref<2x64xf32, #tpu.memory_space<vmem>>, vector<1x8xf32>
    tpu.vector_store %arg19[%c1_150, %c24_151], %123 {strides = array<i32>} : memref<2x64xf32, #tpu.memory_space<vmem>>, vector<1x8xf32>,
    %125 = vector.extract_strided_slice %100 {offsets = [4, 8], sizes = [1, 8], strides = [1, 1]} : vector<8x16xf32> to vector<1x8xf32>
    %c1_152 = arith.constant 1 : index
    %c32_153 = arith.constant 32 : index
    %126 = vector.load %arg19[%c1_152, %c32_153] : memref<2x64xf32, #tpu.memory_space<vmem>>, vector<1x8xf32>
    tpu.vector_store %arg19[%c1_152, %c32_153], %125 {strides = array<i32>} : memref<2x64xf32, #tpu.memory_space<vmem>>, vector<1x8xf32>,
    %127 = vector.extract_strided_slice %100 {offsets = [5, 8], sizes = [1, 8], strides = [1, 1]} : vector<8x16xf32> to vector<1x8xf32>
    %c1_154 = arith.constant 1 : index
    %c40_155 = arith.constant 40 : index
    %128 = vector.load %arg19[%c1_154, %c40_155] : memref<2x64xf32, #tpu.memory_space<vmem>>, vector<1x8xf32>
    tpu.vector_store %arg19[%c1_154, %c40_155], %127 {strides = array<i32>} : memref<2x64xf32, #tpu.memory_space<vmem>>, vector<1x8xf32>,
    %129 = vector.extract_strided_slice %100 {offsets = [6, 8], sizes = [1, 8], strides = [1, 1]} : vector<8x16xf32> to vector<1x8xf32>
    %c1_156 = arith.constant 1 : index
    %c48_157 = arith.constant 48 : index
    %130 = vector.load %arg19[%c1_156, %c48_157] : memref<2x64xf32, #tpu.memory_space<vmem>>, vector<1x8xf32>
    tpu.vector_store %arg19[%c1_156, %c48_157], %129 {strides = array<i32>} : memref<2x64xf32, #tpu.memory_space<vmem>>, vector<1x8xf32>,
    %131 = vector.extract_strided_slice %100 {offsets = [7, 8], sizes = [1, 8], strides = [1, 1]} : vector<8x16xf32> to vector<1x8xf32>
    %c1_158 = arith.constant 1 : index
    %c56_159 = arith.constant 56 : index
    %132 = vector.load %arg19[%c1_158, %c56_159] : memref<2x64xf32, #tpu.memory_space<vmem>>, vector<1x8xf32>
    tpu.vector_store %arg19[%c1_158, %c56_159], %131 {strides = array<i32>} : memref<2x64xf32, #tpu.memory_space<vmem>>, vector<1x8xf32>,
    %c0_160 = arith.constant 0 : index
    %c0_161 = arith.constant 0 : index
    %133 = vector.load %arg19[%c0_160, %c0_161] : memref<2x64xf32, #tpu.memory_space<vmem>>, vector<2x64xf32>
    %c0_162 = arith.constant 0 : index
    %c0_163 = arith.constant 0 : index
    %134 = vector.load %arg8[%c0_162, %c0_163] : memref<64x256xf32, #tpu.memory_space<vmem>>, vector<64x256xf32>
    %cst_164 = arith.constant dense<0.000000e+00> : vector<2x256xf32>
    %135 = tpu.matmul %133, %134, %cst_164 {dimension_numbers = #tpu.dot_dimension_numbers<[1], [0], [0], [1], [0, 0, 1, 1], [], []>} : vector<2x64xf32>, vector<64x256xf32>, vector<2x256xf32> -> vector<2x256xf32>
    %c0_165 = arith.constant 0 : index
    %c0_166 = arith.constant 0 : index
    %136 = vector.load %arg9[%c0_165, %c0_166] : memref<64x256xf32, #tpu.memory_space<vmem>>, vector<64x256xf32>
    %cst_167 = arith.constant dense<0.000000e+00> : vector<2x256xf32>
    %137 = tpu.matmul %133, %136, %cst_167 {dimension_numbers = #tpu.dot_dimension_numbers<[1], [0], [0], [1], [0, 0, 1, 1], [], []>} : vector<2x64xf32>, vector<64x256xf32>, vector<2x256xf32> -> vector<2x256xf32>
    %cst_168 = arith.constant 0.000000e+00 : f32
    %138 = vector.broadcast %cst_168 : f32 to vector<1x64xf32>
    %cst_169 = arith.constant 0.000000e+00 : f32
    %139 = vector.broadcast %cst_169 : f32 to vector<1x64xf32>
    %140 = vector.extract_strided_slice %135 {offsets = [0, 0], sizes = [1, 256], strides = [1, 1]} : vector<2x256xf32> to vector<1x256xf32>
    %141 = vector.extract_strided_slice %137 {offsets = [1, 0], sizes = [1, 256], strides = [1, 1]} : vector<2x256xf32> to vector<1x256xf32>
    %142 = arith.addf %140, %141 : vector<1x256xf32>
    %c0_170 = arith.constant 0 : index
    %c0_171 = arith.constant 0 : index
    %143 = vector.load %arg11[%c0_170, %c0_171] : memref<1x256xf32, #tpu.memory_space<vmem>>, vector<1x256xf32>
    %144 = arith.addf %142, %143 : vector<1x256xf32>
    %c0_172 = arith.constant 0 : index
    %c0_173 = arith.constant 0 : index
    %145 = vector.load %arg10[%c0_172, %c0_173] : memref<64x256xf32, #tpu.memory_space<vmem>>, vector<64x256xf32>
    %cst_174 = arith.constant dense<0.000000e+00> : vector<1x256xf32>
    %146 = tpu.matmul %138, %145, %cst_174 {dimension_numbers = #tpu.dot_dimension_numbers<[1], [0], [0], [1], [0, 0, 1, 1], [], []>} : vector<1x64xf32>, vector<64x256xf32>, vector<1x256xf32> -> vector<1x256xf32>
    %147 = arith.addf %144, %146 : vector<1x256xf32>
    %148 = vector.extract_strided_slice %147 {offsets = [0, 0], sizes = [1, 64], strides = [1, 1]} : vector<1x256xf32> to vector<1x64xf32>
    %149 = arith.negf %148 : vector<1x64xf32>
    %150 = math.exp %149 : vector<1x64xf32>
    %cst_175 = arith.constant 1.000000e+00 : f32
    %151 = vector.broadcast %cst_175 : f32 to vector<1x64xf32>
    %152 = arith.addf %151, %150 : vector<1x64xf32>
    %153 = arith.divf %151, %152 : vector<1x64xf32>
    %154 = vector.extract_strided_slice %147 {offsets = [0, 64], sizes = [1, 64], strides = [1, 1]} : vector<1x256xf32> to vector<1x64xf32>
    %155 = arith.negf %154 : vector<1x64xf32>
    %156 = math.exp %155 : vector<1x64xf32>
    %cst_176 = arith.constant 1.000000e+00 : f32
    %157 = vector.broadcast %cst_176 : f32 to vector<1x64xf32>
    %158 = arith.addf %157, %156 : vector<1x64xf32>
    %159 = arith.divf %157, %158 : vector<1x64xf32>
    %160 = vector.extract_strided_slice %147 {offsets = [0, 128], sizes = [1, 64], strides = [1, 1]} : vector<1x256xf32> to vector<1x64xf32>
    %161 = math.tanh %160 : vector<1x64xf32>
    %162 = vector.extract_strided_slice %147 {offsets = [0, 192], sizes = [1, 64], strides = [1, 1]} : vector<1x256xf32> to vector<1x64xf32>
    %163 = arith.negf %162 : vector<1x64xf32>
    %164 = math.exp %163 : vector<1x64xf32>
    %cst_177 = arith.constant 1.000000e+00 : f32
    %165 = vector.broadcast %cst_177 : f32 to vector<1x64xf32>
    %166 = arith.addf %165, %164 : vector<1x64xf32>
    %167 = arith.divf %165, %166 : vector<1x64xf32>
    %168 = arith.mulf %159, %139 : vector<1x64xf32>
    %169 = arith.mulf %153, %161 : vector<1x64xf32>
    %170 = arith.addf %168, %169 : vector<1x64xf32>
    %171 = math.tanh %170 : vector<1x64xf32>
    %172 = arith.mulf %167, %171 : vector<1x64xf32>
    %173 = vector.extract_strided_slice %172 {offsets = [0, 0], sizes = [1, 32], strides = [1, 1]} : vector<1x64xf32> to vector<1x32xf32>
    %c0_178 = arith.constant 0 : index
    %c0_179 = arith.constant 0 : index
    %174 = vector.load %arg20[%c0_178, %c0_179] : memref<2x64xf32, #tpu.memory_space<vmem>>, vector<1x32xf32>
    tpu.vector_store %arg20[%c0_178, %c0_179], %173 {strides = array<i32>} : memref<2x64xf32, #tpu.memory_space<vmem>>, vector<1x32xf32>,
    %175 = vector.extract_strided_slice %172 {offsets = [0, 32], sizes = [1, 32], strides = [1, 1]} : vector<1x64xf32> to vector<1x32xf32>
    %c1_180 = arith.constant 1 : index
    %c32_181 = arith.constant 32 : index
    %176 = vector.load %arg20[%c1_180, %c32_181] : memref<2x64xf32, #tpu.memory_space<vmem>>, vector<1x32xf32>
    tpu.vector_store %arg20[%c1_180, %c32_181], %175 {strides = array<i32>} : memref<2x64xf32, #tpu.memory_space<vmem>>, vector<1x32xf32>,
    %177 = vector.extract_strided_slice %135 {offsets = [1, 0], sizes = [1, 256], strides = [1, 1]} : vector<2x256xf32> to vector<1x256xf32>
    %178 = vector.extract_strided_slice %137 {offsets = [0, 0], sizes = [1, 256], strides = [1, 1]} : vector<2x256xf32> to vector<1x256xf32>
    %179 = arith.addf %177, %178 : vector<1x256xf32>
    %c0_182 = arith.constant 0 : index
    %c0_183 = arith.constant 0 : index
    %180 = vector.load %arg11[%c0_182, %c0_183] : memref<1x256xf32, #tpu.memory_space<vmem>>, vector<1x256xf32>
    %181 = arith.addf %179, %180 : vector<1x256xf32>
    %c0_184 = arith.constant 0 : index
    %c0_185 = arith.constant 0 : index
    %182 = vector.load %arg10[%c0_184, %c0_185] : memref<64x256xf32, #tpu.memory_space<vmem>>, vector<64x256xf32>
    %cst_186 = arith.constant dense<0.000000e+00> : vector<1x256xf32>
    %183 = tpu.matmul %172, %182, %cst_186 {dimension_numbers = #tpu.dot_dimension_numbers<[1], [0], [0], [1], [0, 0, 1, 1], [], []>} : vector<1x64xf32>, vector<64x256xf32>, vector<1x256xf32> -> vector<1x256xf32>
    %184 = arith.addf %181, %183 : vector<1x256xf32>
    %185 = vector.extract_strided_slice %184 {offsets = [0, 0], sizes = [1, 64], strides = [1, 1]} : vector<1x256xf32> to vector<1x64xf32>
    %186 = arith.negf %185 : vector<1x64xf32>
    %187 = math.exp %186 : vector<1x64xf32>
    %cst_187 = arith.constant 1.000000e+00 : f32
    %188 = vector.broadcast %cst_187 : f32 to vector<1x64xf32>
    %189 = arith.addf %188, %187 : vector<1x64xf32>
    %190 = arith.divf %188, %189 : vector<1x64xf32>
    %191 = vector.extract_strided_slice %184 {offsets = [0, 64], sizes = [1, 64], strides = [1, 1]} : vector<1x256xf32> to vector<1x64xf32>
    %192 = arith.negf %191 : vector<1x64xf32>
    %193 = math.exp %192 : vector<1x64xf32>
    %cst_188 = arith.constant 1.000000e+00 : f32
    %194 = vector.broadcast %cst_188 : f32 to vector<1x64xf32>
    %195 = arith.addf %194, %193 : vector<1x64xf32>
    %196 = arith.divf %194, %195 : vector<1x64xf32>
    %197 = vector.extract_strided_slice %184 {offsets = [0, 128], sizes = [1, 64], strides = [1, 1]} : vector<1x256xf32> to vector<1x64xf32>
    %198 = math.tanh %197 : vector<1x64xf32>
    %199 = vector.extract_strided_slice %184 {offsets = [0, 192], sizes = [1, 64], strides = [1, 1]} : vector<1x256xf32> to vector<1x64xf32>
    %200 = arith.negf %199 : vector<1x64xf32>
    %201 = math.exp %200 : vector<1x64xf32>
    %cst_189 = arith.constant 1.000000e+00 : f32
    %202 = vector.broadcast %cst_189 : f32 to vector<1x64xf32>
    %203 = arith.addf %202, %201 : vector<1x64xf32>
    %204 = arith.divf %202, %203 : vector<1x64xf32>
    %205 = arith.mulf %196, %170 : vector<1x64xf32>
    %206 = arith.mulf %190, %198 : vector<1x64xf32>
    %207 = arith.addf %205, %206 : vector<1x64xf32>
    %208 = math.tanh %207 : vector<1x64xf32>
    %209 = arith.mulf %204, %208 : vector<1x64xf32>
    %210 = vector.extract_strided_slice %209 {offsets = [0, 0], sizes = [1, 32], strides = [1, 1]} : vector<1x64xf32> to vector<1x32xf32>
    %c1_190 = arith.constant 1 : index
    %c0_191 = arith.constant 0 : index
    %211 = vector.load %arg20[%c1_190, %c0_191] : memref<2x64xf32, #tpu.memory_space<vmem>>, vector<1x32xf32>
    tpu.vector_store %arg20[%c1_190, %c0_191], %210 {strides = array<i32>} : memref<2x64xf32, #tpu.memory_space<vmem>>, vector<1x32xf32>,
    %212 = vector.extract_strided_slice %209 {offsets = [0, 32], sizes = [1, 32], strides = [1, 1]} : vector<1x64xf32> to vector<1x32xf32>
    %c0_192 = arith.constant 0 : index
    %c32_193 = arith.constant 32 : index
    %213 = vector.load %arg20[%c0_192, %c32_193] : memref<2x64xf32, #tpu.memory_space<vmem>>, vector<1x32xf32>
    tpu.vector_store %arg20[%c0_192, %c32_193], %212 {strides = array<i32>} : memref<2x64xf32, #tpu.memory_space<vmem>>, vector<1x32xf32>,
    %c0_194 = arith.constant 0 : index
    %c0_195 = arith.constant 0 : index
    %214 = vector.load %arg20[%c0_194, %c0_195] : memref<2x64xf32, #tpu.memory_space<vmem>>, vector<2x64xf32>
    %c0_196 = arith.constant 0 : index
    %c0_197 = arith.constant 0 : index
    %215 = vector.load %arg12[%c0_196, %c0_197] : memref<64x128xf32, #tpu.memory_space<vmem>>, vector<64x128xf32>
    %cst_198 = arith.constant dense<0.000000e+00> : vector<2x128xf32>
    %216 = tpu.matmul %214, %215, %cst_198 {dimension_numbers = #tpu.dot_dimension_numbers<[1], [0], [0], [1], [0, 0, 1, 1], [], []>} : vector<2x64xf32>, vector<64x128xf32>, vector<2x128xf32> -> vector<2x128xf32>
    %c0_199 = arith.constant 0 : index
    %c0_200 = arith.constant 0 : index
    %217 = vector.load %arg13[%c0_199, %c0_200] : memref<1x128xf32, #tpu.memory_space<vmem>>, vector<1x128xf32>
    %218 = vector.broadcast %217 : vector<1x128xf32> to vector<2x128xf32>
    %219 = arith.addf %216, %218 : vector<2x128xf32>
    %cst_201 = arith.constant 0.000000e+00 : f32
    %220 = vector.broadcast %cst_201 : f32 to vector<2x128xf32>
    %221 = arith.maximumf %219, %220 : vector<2x128xf32>
    %c0_202 = arith.constant 0 : index
    %c0_203 = arith.constant 0 : index
    %222 = vector.load %arg14[%c0_202, %c0_203] : memref<128x1xf32, #tpu.memory_space<vmem>>, vector<128x1xf32>
    %cst_204 = arith.constant dense<0.000000e+00> : vector<2x1xf32>
    %223 = tpu.matmul %221, %222, %cst_204 {dimension_numbers = #tpu.dot_dimension_numbers<[1], [0], [0], [1], [0, 0, 1, 1], [], []>} : vector<2x128xf32>, vector<128x1xf32>, vector<2x1xf32> -> vector<2x1xf32>
    %c0_205 = arith.constant 0 : index
    %c0_206 = arith.constant 0 : index
    %224 = vector.load %arg15[%c0_205, %c0_206] : memref<1x1xf32, #tpu.memory_space<vmem>>, vector<1x1xf32>
    %225 = vector.broadcast %224 : vector<1x1xf32> to vector<2x1xf32>
    %226 = arith.addf %223, %225 : vector<2x1xf32>
    %c0_207 = arith.constant 0 : index
    %c0_208 = arith.constant 0 : index
    %227 = vector.load %arg16[%c0_207, %c0_208] : memref<2x1xf32, #tpu.memory_space<vmem>>, vector<2x1xf32>
    tpu.vector_store %arg16[%c0_207, %c0_208], %226 {strides = array<i32>} : memref<2x1xf32, #tpu.memory_space<vmem>>, vector<2x1xf32>,
    return
  }
}

</mosaic_0001>

<llo_original>
// kernel: cnn_lstm_forward.1
$region0: #{cnn_lstm_forward.1}
  #allocation0 [shape = 'u32[]', space=smem, size = 0x4, offset = 0x4, fixed_abs, tag = 'smem constant byte address 0x4 - core index']
  #allocation1 [shape = 'u32[144,128]{1,0:T(1,128)}', space=vmem, size = 0x12000, scoped, tag = 'internal scratch']
  #allocation2 [shape = 'f32[8,46]{1,0:T(8,128)}', space=vmem, size = 0x1000, scoped, tag = 'scratch operand']
  #allocation3 [shape = 'f32[64,32]{1,0:T(8,128)}', space=vmem, size = 0x8000, scoped, tag = 'scratch operand']
  #allocation4 [shape = 'f32[2,64]{1,0:T(2,128)}', space=vmem, size = 0x400, scoped, tag = 'scratch operand']
  #allocation5 [shape = 'f32[2,64]{1,0:T(2,128)}', space=vmem, size = 0x400, scoped, tag = 'scratch operand']
  #allocation6 [shape = 'f32[1,1]{1,0:T(1,128)S(1)}', space=vmem, size = 0x200, scoped, tag = 'scoped memory for cnn_lstm_forward.1']
  %s0 = inlined_call_operand.vmem [shape: f32[4,32], index: 0, kind: input, shape index: {}]
  %s1 = inlined_call_operand.hbm [shape: f32[4,32], index: 1, kind: input, shape index: {}]
  %s2 = inlined_call_operand.hbm [shape: f32[4,3], index: 2, kind: input, shape index: {}]
  %s3 = inlined_call_operand.vmem [shape: f32[8,32], index: 3, kind: input, shape index: {}]
  %s4 = inlined_call_operand.vmem [shape: f32[8,3], index: 4, kind: input, shape index: {}]
  %s5 = inlined_call_operand.vmem [shape: f32[8,64], index: 5, kind: input, shape index: {}]
  %s6 = inlined_call_operand.vmem [shape: f32[8,3], index: 6, kind: input, shape index: {}]
  %s7 = inlined_call_operand.hbm [shape: f32[32,32], index: 7, kind: input, shape index: {}]
  %s8 = inlined_call_operand.vmem [shape: f32[64,256], index: 8, kind: input, shape index: {}]
  %s9 = inlined_call_operand.vmem [shape: f32[64,256], index: 9, kind: input, shape index: {}]
  %s10 = inlined_call_operand.hbm [shape: f32[64,256], index: 10, kind: input, shape index: {}]
  %s11 = inlined_call_operand.vmem [shape: f32[1,256], index: 11, kind: input, shape index: {}]
  %s12 = inlined_call_operand.hbm [shape: f32[64,128], index: 12, kind: input, shape index: {}]
  %s13 = inlined_call_operand.hbm [shape: f32[1,128], index: 13, kind: input, shape index: {}]
  %s14 = inlined_call_operand.vmem [shape: f32[128,1], index: 14, kind: input, shape index: {}]
  %s15 = inlined_call_operand.<no memory space> [shape: f32[1,1], index: 15, kind: input, shape index: {}]
  %s16 = inlined_call_operand.vmem [shape: f32[2,1], index: 16, kind: output, shape index: {}]
  %s17 = sld [smem:[#allocation0]]
  $region98: #{cnn_lstm_forward.1} parent=0
    _
  %s19 = ssub.s32 1, %s17
  %s20 = scalar_select 0, %s19, %s17
  %v21 = vstv %s15
  %22 = vst [vmem:[#allocation6] sm:$0x1] %v21
  $region1: #{cnn_lstm_forward.1} parent=0
    #allocation7 [shape = 'u8[2048]{0}', space=vmem, size = 0x800, scoped, tag = 'input window, operand 1, single buffered']
    #allocation8 [shape = 's32[1]{0}', space=sflag, size = 0x4, scoped, tag = 'scoped memory for cnn_lstm_forward.1']
    #allocation9 [shape = 'u8[2048]{0}', space=vmem, size = 0x800, scoped, tag = 'input window, operand 2, single buffered']
    #allocation10 [shape = 's32[1]{0}', space=sflag, size = 0x4, scoped, tag = 'scoped memory for cnn_lstm_forward.1']
    #allocation11 [shape = 'u8[16384]{0}', space=vmem, size = 0x4000, scoped, tag = 'input window, operand 7, single buffered']
    #allocation12 [shape = 'u8[65536]{0}', space=vmem, size = 0x10000, scoped, tag = 'input window, operand 10, single buffered']
    #allocation13 [shape = 's32[1]{0}', space=sflag, size = 0x4, scoped, tag = 'scoped memory for cnn_lstm_forward.1']
    #allocation14 [shape = 'u8[32768]{0}', space=vmem, size = 0x8000, scoped, tag = 'input window, operand 12, single buffered']
    #allocation15 [shape = 'u8[512]{0}', space=vmem, size = 0x400, scoped, tag = 'input window, operand 13, single buffered']
    #allocation16 [shape = 's32[1]{0}', space=sflag, size = 0x4, scoped, tag = 'scoped memory for cnn_lstm_forward.1']
    %23 = vsyncpa [#allocation8], 0
    %24 = vsyncpa [#allocation10], 0
    %25 = vsyncpa [#allocation13], 0
    %26 = vsyncpa [#allocation16], 0
    // Predicated region
    $region2: #{cnn_lstm_forward.1} parent=1 // pred_check
      _
    $region3: #{cnn_lstm_forward.1} parent=1 // pred_check_branch
      %28 = sbr.rel (0) target = $region5
    $region4: #{cnn_lstm_forward.1} parent=1 // pred_region
      _
    $region5: #{cnn_lstm_forward.1} parent=1 // pred_fallthru
      _
    // Predicated region
    $region6: #{cnn_lstm_forward.1} parent=1 // pred_check
      _
    $region7: #{cnn_lstm_forward.1} parent=1 // pred_check_branch
      %30 = sbr.rel (0) target = $region9
    $region8: #{cnn_lstm_forward.1} parent=1 // pred_region
      %s32 = ssub.s32 64, 64
      %33 = vsyncadd [#allocation8], %s32
      %s35 = sshll.u32 [#allocation7], 4
      %s36 = int_to_ptr.vmem [resolvable:$true] %s35
      %38 = dma.hbm_to_vmem [thread:$0]  %s1, 64, %s36, [#allocation8]
    $region9: #{cnn_lstm_forward.1} parent=1 // pred_fallthru
      _
    // Predicated region
    $region10: #{cnn_lstm_forward.1} parent=1 // pred_check
      _
    $region11: #{cnn_lstm_forward.1} parent=1 // pred_check_branch
      %40 = sbr.rel (0) target = $region13
    $region12: #{cnn_lstm_forward.1} parent=1 // pred_region
      %s42 = ssub.s32 64, 64
      %43 = vsyncadd [#allocation10], %s42
      %s45 = sshll.u32 [#allocation9], 4
      %s46 = int_to_ptr.vmem [resolvable:$true] %s45
      %48 = dma.hbm_to_vmem [thread:$0]  %s2, 64, %s46, [#allocation10]
    $region13: #{cnn_lstm_forward.1} parent=1 // pred_fallthru
      _
    // Predicated region
    $region14: #{cnn_lstm_forward.1} parent=1 // pred_check
      _
    $region15: #{cnn_lstm_forward.1} parent=1 // pred_check_branch
      %50 = sbr.rel (0) target = $region17
    $region16: #{cnn_lstm_forward.1} parent=1 // pred_region
      _
    $region17: #{cnn_lstm_forward.1} parent=1 // pred_fallthru
      _
    // Predicated region
    $region18: #{cnn_lstm_forward.1} parent=1 // pred_check
      _
    $region19: #{cnn_lstm_forward.1} parent=1 // pred_check_branch
      %52 = sbr.rel (0) target = $region21
    $region20: #{cnn_lstm_forward.1} parent=1 // pred_region
      _
    $region21: #{cnn_lstm_forward.1} parent=1 // pred_fallthru
      _
    // Predicated region
    $region22: #{cnn_lstm_forward.1} parent=1 // pred_check
      _
    $region23: #{cnn_lstm_forward.1} parent=1 // pred_check_branch
      %54 = sbr.rel (0) target = $region25
    $region24: #{cnn_lstm_forward.1} parent=1 // pred_region
      _
    $region25: #{cnn_lstm_forward.1} parent=1 // pred_fallthru
      _
    // Predicated region
    $region26: #{cnn_lstm_forward.1} parent=1 // pred_check
      _
    $region27: #{cnn_lstm_forward.1} parent=1 // pred_check_branch
      %56 = sbr.rel (0) target = $region29
    $region28: #{cnn_lstm_forward.1} parent=1 // pred_region
      _
    $region29: #{cnn_lstm_forward.1} parent=1 // pred_fallthru
      _
    // Predicated region
    $region30: #{cnn_lstm_forward.1} parent=1 // pred_check
      _
    $region31: #{cnn_lstm_forward.1} parent=1 // pred_check_branch
      %58 = sbr.rel (0) target = $region33
    $region32: #{cnn_lstm_forward.1} parent=1 // pred_region
      %s60 = ssub.s32 512, 512
      %61 = vsyncadd [#allocation10], %s60
      %s62 = sshll.u32 [#allocation11], 4
      %s63 = int_to_ptr.vmem [resolvable:$true] %s62
      %68 = dma.hbm_to_vmem [thread:$0]  %s7, 512, %s63, [#allocation10], 128, 128, 8
    $region33: #{cnn_lstm_forward.1} parent=1 // pred_fallthru
      _
    // Predicated region
    $region34: #{cnn_lstm_forward.1} parent=1 // pred_check
      _
    $region35: #{cnn_lstm_forward.1} parent=1 // pred_check_branch
      %70 = sbr.rel (0) target = $region37
    $region36: #{cnn_lstm_forward.1} parent=1 // pred_region
      _
    $region37: #{cnn_lstm_forward.1} parent=1 // pred_fallthru
      _
    // Predicated region
    $region38: #{cnn_lstm_forward.1} parent=1 // pred_check
      _
    $region39: #{cnn_lstm_forward.1} parent=1 // pred_check_branch
      %72 = sbr.rel (0) target = $region41
    $region40: #{cnn_lstm_forward.1} parent=1 // pred_region
      _
    $region41: #{cnn_lstm_forward.1} parent=1 // pred_fallthru
      _
    // Predicated region
    $region42: #{cnn_lstm_forward.1} parent=1 // pred_check
      _
    $region43: #{cnn_lstm_forward.1} parent=1 // pred_check_branch
      %74 = sbr.rel (0) target = $region45
    $region44: #{cnn_lstm_forward.1} parent=1 // pred_region
      %s76 = ssub.s32 2048, 2048
      %77 = vsyncadd [#allocation13], %s76
      %s78 = sshll.u32 [#allocation12], 4
      %s79 = int_to_ptr.vmem [resolvable:$true] %s78
      %84 = dma.hbm_to_vmem [thread:$0]  %s10, 2048, %s79, [#allocation13], 256, 256, 16
    $region45: #{cnn_lstm_forward.1} parent=1 // pred_fallthru
      _
    // Predicated region
    $region46: #{cnn_lstm_forward.1} parent=1 // pred_check
      _
    $region47: #{cnn_lstm_forward.1} parent=1 // pred_check_branch
      %86 = sbr.rel (0) target = $region49
    $region48: #{cnn_lstm_forward.1} parent=1 // pred_region
      _
    $region49: #{cnn_lstm_forward.1} parent=1 // pred_fallthru
      _
    // Predicated region
    $region50: #{cnn_lstm_forward.1} parent=1 // pred_check
      _
    $region51: #{cnn_lstm_forward.1} parent=1 // pred_check_branch
      %88 = sbr.rel (0) target = $region53
    $region52: #{cnn_lstm_forward.1} parent=1 // pred_region
      %s90 = ssub.s32 1024, 1024
      %91 = vsyncadd [#allocation13], %s90
      %s92 = sshll.u32 [#allocation14], 4
      %s93 = int_to_ptr.vmem [resolvable:$true] %s92
      %98 = dma.hbm_to_vmem [thread:$0]  %s12, 1024, %s93, [#allocation13], 128, 128, 8
    $region53: #{cnn_lstm_forward.1} parent=1 // pred_fallthru
      _
    // Predicated region
    $region54: #{cnn_lstm_forward.1} parent=1 // pred_check
      _
    $region55: #{cnn_lstm_forward.1} parent=1 // pred_check_branch
      %100 = sbr.rel (0) target = $region57
    $region56: #{cnn_lstm_forward.1} parent=1 // pred_region
      %s102 = ssub.s32 16, 16
      %103 = vsyncadd [#allocation16], %s102
      %s105 = sshll.u32 [#allocation15], 4
      %s106 = int_to_ptr.vmem [resolvable:$true] %s105
      %108 = dma.hbm_to_vmem [thread:$0]  %s13, 16, %s106, [#allocation16]
    $region57: #{cnn_lstm_forward.1} parent=1 // pred_fallthru
      _
    // Predicated region
    $region58: #{cnn_lstm_forward.1} parent=1 // pred_check
      _
    $region59: #{cnn_lstm_forward.1} parent=1 // pred_check_branch
      %110 = sbr.rel (0) target = $region61
    $region60: #{cnn_lstm_forward.1} parent=1 // pred_region
      _
    $region61: #{cnn_lstm_forward.1} parent=1 // pred_fallthru
      _
    // Predicated region
    $region62: #{cnn_lstm_forward.1} parent=1 // pred_check
      _
    $region63: #{cnn_lstm_forward.1} parent=1 // pred_check_branch
      %112 = sbr.rel (0) target = $region65
    $region64: #{cnn_lstm_forward.1} parent=1 // pred_region
      _
    $region65: #{cnn_lstm_forward.1} parent=1 // pred_fallthru
      _
    // Predicated region
    $region66: #{cnn_lstm_forward.1} parent=1 // pred_check
      _
    $region67: #{cnn_lstm_forward.1} parent=1 // pred_check_branch
      %114 = sbr.rel (0) target = $region69
    $region68: #{cnn_lstm_forward.1} parent=1 // pred_region
      %115 = dma.done [#allocation8], 64
    $region69: #{cnn_lstm_forward.1} parent=1 // pred_fallthru
      _
    // Predicated region
    $region70: #{cnn_lstm_forward.1} parent=1 // pred_check
      _
    $region71: #{cnn_lstm_forward.1} parent=1 // pred_check_branch
      %117 = sbr.rel (0) target = $region73
    $region72: #{cnn_lstm_forward.1} parent=1 // pred_region
      %118 = dma.done [#allocation10], 64
    $region73: #{cnn_lstm_forward.1} parent=1 // pred_fallthru
      _
    // Predicated region
    $region74: #{cnn_lstm_forward.1} parent=1 // pred_check
      _
    $region75: #{cnn_lstm_forward.1} parent=1 // pred_check_branch
      %120 = sbr.rel (0) target = $region77
    $region76: #{cnn_lstm_forward.1} parent=1 // pred_region
      %121 = dma.done [#allocation10], 512
    $region77: #{cnn_lstm_forward.1} parent=1 // pred_fallthru
      _
    // Predicated region
    $region78: #{cnn_lstm_forward.1} parent=1 // pred_check
      _
    $region79: #{cnn_lstm_forward.1} parent=1 // pred_check_branch
      %123 = sbr.rel (0) target = $region81
    $region80: #{cnn_lstm_forward.1} parent=1 // pred_region
      %124 = dma.done [#allocation13], 2048
    $region81: #{cnn_lstm_forward.1} parent=1 // pred_fallthru
      _
    // Predicated region
    $region82: #{cnn_lstm_forward.1} parent=1 // pred_check
      _
    $region83: #{cnn_lstm_forward.1} parent=1 // pred_check_branch
      %126 = sbr.rel (0) target = $region85
    $region84: #{cnn_lstm_forward.1} parent=1 // pred_region
      %127 = dma.done [#allocation13], 1024
    $region85: #{cnn_lstm_forward.1} parent=1 // pred_fallthru
      _
    // Predicated region
    $region86: #{cnn_lstm_forward.1} parent=1 // pred_check
      _
    $region87: #{cnn_lstm_forward.1} parent=1 // pred_check_branch
      %129 = sbr.rel (0) target = $region89
    $region88: #{cnn_lstm_forward.1} parent=1 // pred_region
      %130 = dma.done [#allocation16], 16
    $region89: #{cnn_lstm_forward.1} parent=1 // pred_fallthru
      _
    %vm131 = vcmask 375808
    %132 = vst.msk [vmem:[#allocation2] sm:$0xff] %vm131, 0.0
    %v133 = vld [vmem:[%s0] sm:$0xf]
    %135 = vrot.lane.b32.xlu0 %v133, 6
    %v136 = vpop.permute.xlu0 %135
    %vm138 = vcmask 306224
    %139 = vst.msk [vmem:[#allocation2] sm:$0xf] %vm138, %v136
    %v140 = vld [vmem:[#allocation2] sm:$0xf]
    %vm141 = vcmask 257024
    %142 = vst.msk [vmem:[#allocation3] sm:$0xf] %vm141, %v140
    %v143 = vld [vmem:[#allocation2] sm:$0xf]
    %145 = vrot.lane.b32.xlu0 %v143, 126
    %v146 = vpop.permute.xlu0 %145
    %148 = vst.msk [vmem:[#allocation3 + $0x4] sm:$0xf] %vm141, %v146
    %v149 = vld [vmem:[#allocation2] sm:$0xf]
    %151 = vrot.lane.b32.xlu0 %v149, 124
    %v152 = vpop.permute.xlu0 %151
    %154 = vst.msk [vmem:[#allocation3 + $0x8] sm:$0xf] %vm141, %v152
    %v155 = vld [vmem:[#allocation2] sm:$0xf]
    %157 = vrot.lane.b32.xlu0 %v155, 122
    %v158 = vpop.permute.xlu0 %157
    %160 = vst.msk [vmem:[#allocation3 + $0xc] sm:$0xf] %vm141, %v158
    %v161 = vld [vmem:[#allocation2] sm:$0xf]
    %163 = vrot.lane.b32.xlu0 %v161, 120
    %v164 = vpop.permute.xlu0 %163
    %166 = vst.msk [vmem:[#allocation3 + $0x10] sm:$0xf] %vm141, %v164
    %v167 = vld [vmem:[#allocation2] sm:$0xf]
    %169 = vrot.lane.b32.xlu0 %v167, 118
    %v170 = vpop.permute.xlu0 %169
    %172 = vst.msk [vmem:[#allocation3 + $0x14] sm:$0xf] %vm141, %v170
    %v173 = vld [vmem:[#allocation2] sm:$0xf]
    %175 = vrot.lane.b32.xlu0 %v173, 116
    %v176 = vpop.permute.xlu0 %175
    %178 = vst.msk [vmem:[#allocation3 + $0x18] sm:$0xf] %vm141, %v176
    %v179 = vld [vmem:[#allocation2] sm:$0xf]
    %181 = vrot.lane.b32.xlu0 %v179, 114
    %v182 = vpop.permute.xlu0 %181
    %184 = vst.msk [vmem:[#allocation3 + $0x1c] sm:$0xf] %vm141, %v182
    %v185 = vld [vmem:[#allocation7] sm:$0xf]
    %v186 = vld [vmem:[#allocation3] sm:$0xff]
    %v187 = vld [vmem:[#allocation3 + $0x8] sm:$0xff]
    %v188 = vld [vmem:[#allocation3 + $0x10] sm:$0xff]
    %v189 = vld [vmem:[#allocation3 + $0x18] sm:$0xff]
    %v190 = vld [vmem:[#allocation9] sm:$0xf]
    %192 = vset.pattern.permute.xlu0 0
    %193 = vperm.xlu0 %192, %v190
    %v194 = vpop.permute.xlu0 %193
    %vm196 = vcmask 261120
    %v198 = vsel %vm196, %v185, 0
    %200 = vmatprep.subr.mxu0 0.0
    %201 = vmatpush1.msra.mxu0 %v186
    %202 = vmatprep.subr.mxu0 0.0
    %203 = vmatpush1.msra.mxu0 %v187
    %204 = vmatprep.subr.mxu0 0.0
    %205 = vmatpush1.msra.mxu0 %v188
    %206 = vmatprep.subr.mxu0 0.0
    %207 = vmatpush1.msra.mxu0 %v189
    %208 = vmatprep.subr.mxu0 0.0
    %209 = vmatpush1.msra.mxu0 0.0
    %210 = vmatprep.subr.mxu0 0.0
    %211 = vmatpush1.msra.mxu0 0.0
    %212 = vmatprep.subr.mxu0 0.0
    %213 = vmatpush1.msra.mxu0 0.0
    %214 = vmatprep.subr.mxu0 0.0
    %215 = vmatpush1.msra.mxu0 0.0
    %216 = vmatprep.subr.mxu0 0.0
    %217 = vmatpush1.msra.mxu0 0.0
    %218 = vmatprep.subr.mxu0 0.0
    %219 = vmatpush1.msra.mxu0 0.0
    %220 = vmatprep.subr.mxu0 0.0
    %221 = vmatpush1.msra.mxu0 0.0
    %222 = vmatprep.subr.mxu0 0.0
    %223 = vmatpush1.msra.mxu0 0.0
    %224 = vmatprep.subr.mxu0 0.0
    %225 = vmatpush1.msra.mxu0 0.0
    %226 = vmatprep.subr.mxu0 0.0
    %227 = vmatpush1.msra.mxu0 0.0
    %228 = vmatprep.subr.mxu0 0.0
    %229 = vmatpush1.msra.mxu0 0.0
    %230 = vmatprep.subr.mxu0 0.0
    %231 = vmatpush1.msra.mxu0 0.0
    %232 = vmatprep.subr.mxu0 0.0
    %233 = vmatpush1.msra.mxu0 0.0
    %234 = vmatprep.subr.mxu0 0.0
    %235 = vmatpush1.msra.mxu0 0.0
    %236 = vmatprep.subr.mxu0 0.0
    %237 = vmatpush1.msra.mxu0 0.0
    %238 = vmatprep.subr.mxu0 0.0
    %239 = vmatpush1.msra.mxu0 0.0
    %240 = vmatprep.subr.mxu0 0.0
    %241 = vmatpush1.msra.mxu0 0.0
    %242 = vmatprep.subr.mxu0 0.0
    %243 = vmatpush1.msra.mxu0 0.0
    %244 = vmatprep.subr.mxu0 0.0
    %245 = vmatpush1.msra.mxu0 0.0
    %246 = vmatprep.subr.mxu0 0.0
    %247 = vmatpush1.msra.mxu0 0.0
    %248 = vmatprep.subr.mxu0 0.0
    %249 = vmatpush1.msra.mxu0 0.0
    %250 = vmatprep.subr.mxu0 0.0
    %251 = vmatpush1.msra.mxu0 0.0
    %252 = vmatprep.subr.mxu0 0.0
    %253 = vmatpush1.msra.mxu0 0.0
    %254 = vmatprep.subr.mxu0 0.0
    %255 = vmatpush1.msra.mxu0 0.0
    %256 = vmatprep.subr.mxu0 0.0
    %257 = vmatpush1.msra.mxu0 0.0
    %258 = vmatprep.subr.mxu0 0.0
    %259 = vmatpush1.msra.mxu0 0.0
    %260 = vmatprep.subr.mxu0 0.0
    %261 = vmatpush1.msra.mxu0 0.0
    %262 = vmatprep.subr.mxu0 0.0
    %263 = vmatpush1.msra.mxu0 0.0
    %264 = vmatprep.mubr.f32.mxu0 0.0
    %265 = vmatmul.mubr.f32.gmra.mrb[0].mxu0 %v198
    %v266 = vpop.f32.mrb[0].mxu0
    %v267 = vadd.f32 %v194, %v266
    %v268 = vpop.f32.mrb[0].mxu0
    %269 = vdwg.mxu0
    %v270 = vmax.f32 %v267, 0.0
    %271 = vset.pattern.permute.xlu0 1
    %272 = vperm.xlu0 %271, %v190
    %v273 = vpop.permute.xlu0 %272
    %v275 = vmul.f32 %v270, %v273
    %276 = vset.pattern.permute.xlu0 2
    %277 = vperm.xlu0 %276, %v190
    %v278 = vpop.permute.xlu0 %277
    %v280 = vadd.f32 %v275, %v278
    %282 = vrot.lane.b32.xlu0 %v280, 6
    %v283 = vpop.permute.xlu0 %282
    %285 = vst.msk [vmem:[#allocation2] sm:$0xf] %vm138, %v283
    %v286 = vld [vmem:[#allocation2] sm:$0xf]
    %287 = vst.msk [vmem:[#allocation3] sm:$0xf] %vm141, %v286
    %v288 = vld [vmem:[#allocation2] sm:$0xf]
    %290 = vrot.lane.b32.xlu0 %v288, 126
    %v291 = vpop.permute.xlu0 %290
    %293 = vst.msk [vmem:[#allocation3 + $0x4] sm:$0xf] %vm141, %v291
    %v294 = vld [vmem:[#allocation2] sm:$0xf]
    %296 = vrot.lane.b32.xlu0 %v294, 124
    %v297 = vpop.permute.xlu0 %296
    %299 = vst.msk [vmem:[#allocation3 + $0x8] sm:$0xf] %vm141, %v297
    %v300 = vld [vmem:[#allocation2] sm:$0xf]
    %302 = vrot.lane.b32.xlu0 %v300, 122
    %v303 = vpop.permute.xlu0 %302
    %305 = vst.msk [vmem:[#allocation3 + $0xc] sm:$0xf] %vm141, %v303
    %v306 = vld [vmem:[#allocation2] sm:$0xf]
    %308 = vrot.lane.b32.xlu0 %v306, 120
    %v309 = vpop.permute.xlu0 %308
    %311 = vst.msk [vmem:[#allocation3 + $0x10] sm:$0xf] %vm141, %v309
    %v312 = vld [vmem:[#allocation2] sm:$0xf]
    %314 = vrot.lane.b32.xlu0 %v312, 118
    %v315 = vpop.permute.xlu0 %314
    %317 = vst.msk [vmem:[#allocation3 + $0x14] sm:$0xf] %vm141, %v315
    %v318 = vld [vmem:[#allocation2] sm:$0xf]
    %320 = vrot.lane.b32.xlu0 %v318, 116
    %v321 = vpop.permute.xlu0 %320
    %323 = vst.msk [vmem:[#allocation3 + $0x18] sm:$0xf] %vm141, %v321
    %v324 = vld [vmem:[#allocation2] sm:$0xf]
    %326 = vrot.lane.b32.xlu0 %v324, 114
    %v327 = vpop.permute.xlu0 %326
    %329 = vst.msk [vmem:[#allocation3 + $0x1c] sm:$0xf] %vm141, %v327
    %v330 = vld [vmem:[%s3] sm:$0xff]
    %v331 = vld [vmem:[#allocation3] sm:$0xff]
    %v332 = vld [vmem:[#allocation3 + $0x8] sm:$0xff]
    %v333 = vld [vmem:[#allocation3 + $0x10] sm:$0xff]
    %v334 = vld [vmem:[#allocation3 + $0x18] sm:$0xff]
    %v335 = vld [vmem:[%s4] sm:$0xff]
    %337 = vset.pattern.permute.xlu0 0
    %338 = vperm.xlu0 %337, %v335
    %v339 = vpop.permute.xlu0 %338
    %v342 = vsel %vm196, %v330, 0
    %344 = vmatprep.subr.mxu0 0.0
    %345 = vmatpush1.msra.mxu0 %v331
    %346 = vmatprep.subr.mxu0 0.0
    %347 = vmatpush1.msra.mxu0 %v332
    %348 = vmatprep.subr.mxu0 0.0
    %349 = vmatpush1.msra.mxu0 %v333
    %350 = vmatprep.subr.mxu0 0.0
    %351 = vmatpush1.msra.mxu0 %v334
    %352 = vmatprep.subr.mxu0 0.0
    %353 = vmatpush1.msra.mxu0 0.0
    %354 = vmatprep.subr.mxu0 0.0
    %355 = vmatpush1.msra.mxu0 0.0
    %356 = vmatprep.subr.mxu0 0.0
    %357 = vmatpush1.msra.mxu0 0.0
    %358 = vmatprep.subr.mxu0 0.0
    %359 = vmatpush1.msra.mxu0 0.0
    %360 = vmatprep.subr.mxu0 0.0
    %361 = vmatpush1.msra.mxu0 0.0
    %362 = vmatprep.subr.mxu0 0.0
    %363 = vmatpush1.msra.mxu0 0.0
    %364 = vmatprep.subr.mxu0 0.0
    %365 = vmatpush1.msra.mxu0 0.0
    %366 = vmatprep.subr.mxu0 0.0
    %367 = vmatpush1.msra.mxu0 0.0
    %368 = vmatprep.subr.mxu0 0.0
    %369 = vmatpush1.msra.mxu0 0.0
    %370 = vmatprep.subr.mxu0 0.0
    %371 = vmatpush1.msra.mxu0 0.0
    %372 = vmatprep.subr.mxu0 0.0
    %373 = vmatpush1.msra.mxu0 0.0
    %374 = vmatprep.subr.mxu0 0.0
    %375 = vmatpush1.msra.mxu0 0.0
    %376 = vmatprep.subr.mxu0 0.0
    %377 = vmatpush1.msra.mxu0 0.0
    %378 = vmatprep.subr.mxu0 0.0
    %379 = vmatpush1.msra.mxu0 0.0
    %380 = vmatprep.subr.mxu0 0.0
    %381 = vmatpush1.msra.mxu0 0.0
    %382 = vmatprep.subr.mxu0 0.0
    %383 = vmatpush1.msra.mxu0 0.0
    %384 = vmatprep.subr.mxu0 0.0
    %385 = vmatpush1.msra.mxu0 0.0
    %386 = vmatprep.subr.mxu0 0.0
    %387 = vmatpush1.msra.mxu0 0.0
    %388 = vmatprep.subr.mxu0 0.0
    %389 = vmatpush1.msra.mxu0 0.0
    %390 = vmatprep.subr.mxu0 0.0
    %391 = vmatpush1.msra.mxu0 0.0
    %392 = vmatprep.subr.mxu0 0.0
    %393 = vmatpush1.msra.mxu0 0.0
    %394 = vmatprep.subr.mxu0 0.0
    %395 = vmatpush1.msra.mxu0 0.0
    %396 = vmatprep.subr.mxu0 0.0
    %397 = vmatpush1.msra.mxu0 0.0
    %398 = vmatprep.subr.mxu0 0.0
    %399 = vmatpush1.msra.mxu0 0.0
    %400 = vmatprep.subr.mxu0 0.0
    %401 = vmatpush1.msra.mxu0 0.0
    %402 = vmatprep.subr.mxu0 0.0
    %403 = vmatpush1.msra.mxu0 0.0
    %404 = vmatprep.subr.mxu0 0.0
    %405 = vmatpush1.msra.mxu0 0.0
    %406 = vmatprep.subr.mxu0 0.0
    %407 = vmatpush1.msra.mxu0 0.0
    %408 = vmatprep.mubr.f32.mxu0 0.0
    %409 = vmatmul.mubr.f32.gmra.mrb[0].mxu0 %v342
    %v410 = vpop.f32.mrb[0].mxu0
    %v411 = vadd.f32 %v339, %v410
    %v412 = vpop.f32.mrb[0].mxu0
    %413 = vdwg.mxu0
    %v414 = vmax.f32 %v411, 0.0
    %415 = vset.pattern.permute.xlu0 1
    %416 = vperm.xlu0 %415, %v335
    %v417 = vpop.permute.xlu0 %416
    %v419 = vmul.f32 %v414, %v417
    %420 = vset.pattern.permute.xlu0 2
    %421 = vperm.xlu0 %420, %v335
    %v422 = vpop.permute.xlu0 %421
    %v424 = vadd.f32 %v419, %v422
    %426 = vrot.lane.b32.xlu0 %v424, 6
    %v427 = vpop.permute.xlu0 %426
    %vm429 = vcmask 310320
    %430 = vst.msk [vmem:[#allocation2] sm:$0xff] %vm429, %v427
    %v431 = vld [vmem:[#allocation2] sm:$0xff]
    %432 = vst.msk [vmem:[#allocation3] sm:$0xff] %vm196, %v431
    %v433 = vld [vmem:[#allocation2] sm:$0xff]
    %435 = vrot.lane.b32.xlu0 %v433, 126
    %v436 = vpop.permute.xlu0 %435
    %438 = vst.msk [vmem:[#allocation3 + $0x8] sm:$0xff] %vm196, %v436
    %v439 = vld [vmem:[#allocation2] sm:$0xff]
    %441 = vrot.lane.b32.xlu0 %v439, 124
    %v442 = vpop.permute.xlu0 %441
    %444 = vst.msk [vmem:[#allocation3 + $0x10] sm:$0xff] %vm196, %v442
    %v445 = vld [vmem:[#allocation2] sm:$0xff]
    %447 = vrot.lane.b32.xlu0 %v445, 122
    %v448 = vpop.permute.xlu0 %447
    %450 = vst.msk [vmem:[#allocation3 + $0x18] sm:$0xff] %vm196, %v448
    %v451 = vld [vmem:[#allocation2] sm:$0xff]
    %453 = vrot.lane.b32.xlu0 %v451, 120
    %v454 = vpop.permute.xlu0 %453
    %456 = vst.msk [vmem:[#allocation3 + $0x20] sm:$0xff] %vm196, %v454
    %v457 = vld [vmem:[#allocation2] sm:$0xff]
    %459 = vrot.lane.b32.xlu0 %v457, 118
    %v460 = vpop.permute.xlu0 %459
    %462 = vst.msk [vmem:[#allocation3 + $0x28] sm:$0xff] %vm196, %v460
    %v463 = vld [vmem:[#allocation2] sm:$0xff]
    %465 = vrot.lane.b32.xlu0 %v463, 116
    %v466 = vpop.permute.xlu0 %465
    %468 = vst.msk [vmem:[#allocation3 + $0x30] sm:$0xff] %vm196, %v466
    %v469 = vld [vmem:[#allocation2] sm:$0xff]
    %471 = vrot.lane.b32.xlu0 %v469, 114
    %v472 = vpop.permute.xlu0 %471
    %474 = vst.msk [vmem:[#allocation3 + $0x38] sm:$0xff] %vm196, %v472
    %v475 = vld [vmem:[%s5] sm:$0xff]
    %v476 = vld [vmem:[#allocation3] sm:$0xff]
    %v477 = vld [vmem:[#allocation3 + $0x8] sm:$0xff]
    %v478 = vld [vmem:[#allocation3 + $0x10] sm:$0xff]
    %v479 = vld [vmem:[#allocation3 + $0x18] sm:$0xff]
    %v480 = vld [vmem:[#allocation3 + $0x20] sm:$0xff]
    %v481 = vld [vmem:[#allocation3 + $0x28] sm:$0xff]
    %v482 = vld [vmem:[#allocation3 + $0x30] sm:$0xff]
    %v483 = vld [vmem:[#allocation3 + $0x38] sm:$0xff]
    %v484 = vld [vmem:[%s6] sm:$0xff]
    %486 = vset.pattern.permute.xlu0 0
    %487 = vperm.xlu0 %486, %v484
    %v488 = vpop.permute.xlu0 %487
    %vm490 = vcmask 523264
    %v492 = vsel %vm490, %v475, 0
    %494 = vmatprep.subr.mxu0 0.0
    %495 = vmatpush1.msra.mxu0 %v476
    %496 = vmatprep.subr.mxu0 0.0
    %497 = vmatpush1.msra.mxu0 %v477
    %498 = vmatprep.subr.mxu0 0.0
    %499 = vmatpush1.msra.mxu0 %v478
    %500 = vmatprep.subr.mxu0 0.0
    %501 = vmatpush1.msra.mxu0 %v479
    %502 = vmatprep.subr.mxu0 0.0
    %503 = vmatpush1.msra.mxu0 %v480
    %504 = vmatprep.subr.mxu0 0.0
    %505 = vmatpush1.msra.mxu0 %v481
    %506 = vmatprep.subr.mxu0 0.0
    %507 = vmatpush1.msra.mxu0 %v482
    %508 = vmatprep.subr.mxu0 0.0
    %509 = vmatpush1.msra.mxu0 %v483
    %510 = vmatprep.subr.mxu0 0.0
    %511 = vmatpush1.msra.mxu0 0.0
    %512 = vmatprep.subr.mxu0 0.0
    %513 = vmatpush1.msra.mxu0 0.0
    %514 = vmatprep.subr.mxu0 0.0
    %515 = vmatpush1.msra.mxu0 0.0
    %516 = vmatprep.subr.mxu0 0.0
    %517 = vmatpush1.msra.mxu0 0.0
    %518 = vmatprep.subr.mxu0 0.0
    %519 = vmatpush1.msra.mxu0 0.0
    %520 = vmatprep.subr.mxu0 0.0
    %521 = vmatpush1.msra.mxu0 0.0
    %522 = vmatprep.subr.mxu0 0.0
    %523 = vmatpush1.msra.mxu0 0.0
    %524 = vmatprep.subr.mxu0 0.0
    %525 = vmatpush1.msra.mxu0 0.0
    %526 = vmatprep.subr.mxu0 0.0
    %527 = vmatpush1.msra.mxu0 0.0
    %528 = vmatprep.subr.mxu0 0.0
    %529 = vmatpush1.msra.mxu0 0.0
    %530 = vmatprep.subr.mxu0 0.0
    %531 = vmatpush1.msra.mxu0 0.0
    %532 = vmatprep.subr.mxu0 0.0
    %533 = vmatpush1.msra.mxu0 0.0
    %534 = vmatprep.subr.mxu0 0.0
    %535 = vmatpush1.msra.mxu0 0.0
    %536 = vmatprep.subr.mxu0 0.0
    %537 = vmatpush1.msra.mxu0 0.0
    %538 = vmatprep.subr.mxu0 0.0
    %539 = vmatpush1.msra.mxu0 0.0
    %540 = vmatprep.subr.mxu0 0.0
    %541 = vmatpush1.msra.mxu0 0.0
    %542 = vmatprep.subr.mxu0 0.0
    %543 = vmatpush1.msra.mxu0 0.0
    %544 = vmatprep.subr.mxu0 0.0
    %545 = vmatpush1.msra.mxu0 0.0
    %546 = vmatprep.subr.mxu0 0.0
    %547 = vmatpush1.msra.mxu0 0.0
    %548 = vmatprep.subr.mxu0 0.0
    %549 = vmatpush1.msra.mxu0 0.0
    %550 = vmatprep.subr.mxu0 0.0
    %551 = vmatpush1.msra.mxu0 0.0
    %552 = vmatprep.subr.mxu0 0.0
    %553 = vmatpush1.msra.mxu0 0.0
    %554 = vmatprep.subr.mxu0 0.0
    %555 = vmatpush1.msra.mxu0 0.0
    %556 = vmatprep.subr.mxu0 0.0
    %557 = vmatpush1.msra.mxu0 0.0
    %558 = vmatprep.mubr.f32.mxu0 0.0
    %559 = vmatmul.mubr.f32.gmra.mrb[0].mxu0 %v492
    %v560 = vpop.f32.mrb[0].mxu0
    %v561 = vadd.f32 %v488, %v560
    %v562 = vpop.f32.mrb[0].mxu0
    %563 = vdwg.mxu0
    %v564 = vmax.f32 %v561, 0.0
    %565 = vset.pattern.permute.xlu0 1
    %566 = vperm.xlu0 %565, %v484
    %v567 = vpop.permute.xlu0 %566
    %v569 = vmul.f32 %v564, %v567
    %570 = vset.pattern.permute.xlu0 2
    %571 = vperm.xlu0 %570, %v484
    %v572 = vpop.permute.xlu0 %571
    %v574 = vadd.f32 %v569, %v572
    %v575 = vld [vmem:[#allocation11] sm:$0xff]
    %v576 = vld [vmem:[#allocation11 + $0x8] sm:$0xff]
    %v577 = vld [vmem:[#allocation11 + $0x10] sm:$0xff]
    %v578 = vld [vmem:[#allocation11 + $0x18] sm:$0xff]
    %v580 = vsel %vm196, %v574, 0
    %582 = vmatprep.subr.mxu0 0.0
    %583 = vmatpush1.msra.mxu0 %v575
    %584 = vmatprep.subr.mxu0 0.0
    %585 = vmatpush1.msra.mxu0 %v576
    %586 = vmatprep.subr.mxu0 0.0
    %587 = vmatpush1.msra.mxu0 %v577
    %588 = vmatprep.subr.mxu0 0.0
    %589 = vmatpush1.msra.mxu0 %v578
    %590 = vmatprep.subr.mxu0 0.0
    %591 = vmatpush1.msra.mxu0 0.0
    %592 = vmatprep.subr.mxu0 0.0
    %593 = vmatpush1.msra.mxu0 0.0
    %594 = vmatprep.subr.mxu0 0.0
    %595 = vmatpush1.msra.mxu0 0.0
    %596 = vmatprep.subr.mxu0 0.0
    %597 = vmatpush1.msra.mxu0 0.0
    %598 = vmatprep.subr.mxu0 0.0
    %599 = vmatpush1.msra.mxu0 0.0
    %600 = vmatprep.subr.mxu0 0.0
    %601 = vmatpush1.msra.mxu0 0.0
    %602 = vmatprep.subr.mxu0 0.0
    %603 = vmatpush1.msra.mxu0 0.0
    %604 = vmatprep.subr.mxu0 0.0
    %605 = vmatpush1.msra.mxu0 0.0
    %606 = vmatprep.subr.mxu0 0.0
    %607 = vmatpush1.msra.mxu0 0.0
    %608 = vmatprep.subr.mxu0 0.0
    %609 = vmatpush1.msra.mxu0 0.0
    %610 = vmatprep.subr.mxu0 0.0
    %611 = vmatpush1.msra.mxu0 0.0
    %612 = vmatprep.subr.mxu0 0.0
    %613 = vmatpush1.msra.mxu0 0.0
    %614 = vmatprep.subr.mxu0 0.0
    %615 = vmatpush1.msra.mxu0 0.0
    %616 = vmatprep.subr.mxu0 0.0
    %617 = vmatpush1.msra.mxu0 0.0
    %618 = vmatprep.subr.mxu0 0.0
    %619 = vmatpush1.msra.mxu0 0.0
    %620 = vmatprep.subr.mxu0 0.0
    %621 = vmatpush1.msra.mxu0 0.0
    %622 = vmatprep.subr.mxu0 0.0
    %623 = vmatpush1.msra.mxu0 0.0
    %624 = vmatprep.subr.mxu0 0.0
    %625 = vmatpush1.msra.mxu0 0.0
    %626 = vmatprep.subr.mxu0 0.0
    %627 = vmatpush1.msra.mxu0 0.0
    %628 = vmatprep.subr.mxu0 0.0
    %629 = vmatpush1.msra.mxu0 0.0
    %630 = vmatprep.subr.mxu0 0.0
    %631 = vmatpush1.msra.mxu0 0.0
    %632 = vmatprep.subr.mxu0 0.0
    %633 = vmatpush1.msra.mxu0 0.0
    %634 = vmatprep.subr.mxu0 0.0
    %635 = vmatpush1.msra.mxu0 0.0
    %636 = vmatprep.subr.mxu0 0.0
    %637 = vmatpush1.msra.mxu0 0.0
    %638 = vmatprep.subr.mxu0 0.0
    %639 = vmatpush1.msra.mxu0 0.0
    %640 = vmatprep.subr.mxu0 0.0
    %641 = vmatpush1.msra.mxu0 0.0
    %642 = vmatprep.subr.mxu0 0.0
    %643 = vmatpush1.msra.mxu0 0.0
    %644 = vmatprep.subr.mxu0 0.0
    %645 = vmatpush1.msra.mxu0 0.0
    %646 = vmatprep.mubr.f32.mxu0 0.0
    %647 = vmatmul.mubr.f32.gmra.mrb[0].mxu0 %v580
    %v648 = vpop.f32.mrb[0].mxu0
    %v649 = vadd.f32 0.0, %v648
    %v650 = vpop.f32.mrb[0].mxu0
    %651 = vdwg.mxu0
    %653 = vrot.lane.b32.xlu0 %v649, 112
    %v654 = vpop.permute.xlu0 %653
    %v656 = vmax.f32 %v649, %v654
    %vm657 = vcmask 57344
    %658 = vst.msk [vmem:[#allocation4] sm:$0x1] %vm657, %v656
    %660 = vrot.lane.b32.xlu0 %v656, 8
    %v661 = vpop.permute.xlu0 %660
    %vm663 = vcmask 123969
    %664 = vst.msk [vmem:[#allocation4 - $0x1] sm:$0x2] %vm663, %v661
    %665 = vrot.lane.b32.xlu0 %v656, 16
    %v666 = vpop.permute.xlu0 %665
    %vm668 = vcmask 190594
    %669 = vst.msk [vmem:[#allocation4 - $0x2] sm:$0x4] %vm668, %v666
    %670 = vrot.lane.b32.xlu0 %v656, 24
    %v671 = vpop.permute.xlu0 %670
    %vm673 = vcmask 257219
    %674 = vst.msk [vmem:[#allocation4 - $0x3] sm:$0x8] %vm673, %v671
    %675 = vrot.lane.b32.xlu0 %v656, 32
    %v676 = vpop.permute.xlu0 %675
    %vm678 = vcmask 323844
    %679 = vst.msk [vmem:[#allocation4 - $0x4] sm:$0x10] %vm678, %v676
    %680 = vrot.lane.b32.xlu0 %v656, 40
    %v681 = vpop.permute.xlu0 %680
    %vm683 = vcmask 390469
    %684 = vst.msk [vmem:[#allocation4 - $0x5] sm:$0x20] %vm683, %v681
    %685 = vrot.lane.b32.xlu0 %v656, 48
    %v686 = vpop.permute.xlu0 %685
    %vm688 = vcmask 457094
    %689 = vst.msk [vmem:[#allocation4 - $0x6] sm:$0x40] %vm688, %v686
    %690 = vrot.lane.b32.xlu0 %v656, 56
    %v691 = vpop.permute.xlu0 %690
    %vm693 = vcmask 523719
    %694 = vst.msk [vmem:[#allocation4 - $0x7] sm:$0x80] %vm693, %v691
    %695 = vrot.lane.b32.xlu0 %v656, 120
    %v696 = vpop.permute.xlu0 %695
    %698 = vst.msk [vmem:[#allocation4 + $0x1] sm:$0x1] %vm657, %v696
    %699 = vst.msk [vmem:[#allocation4] sm:$0x2] %vm663, %v656
    %700 = vst.msk [vmem:[#allocation4 - $0x1] sm:$0x4] %vm668, %v661
    %701 = vst.msk [vmem:[#allocation4 - $0x2] sm:$0x8] %vm673, %v666
    %702 = vst.msk [vmem:[#allocation4 - $0x3] sm:$0x10] %vm678, %v671
    %703 = vst.msk [vmem:[#allocation4 - $0x4] sm:$0x20] %vm683, %v676
    %704 = vst.msk [vmem:[#allocation4 - $0x5] sm:$0x40] %vm688, %v681
    %705 = vst.msk [vmem:[#allocation4 - $0x6] sm:$0x80] %vm693, %v686
    %v706 = vld [vmem:[#allocation4] sm:$0x3]
    %v707 = vld [vmem:[%s8] sm:$0xff]
    %v708 = vld [vmem:[%s8 + $0x8] sm:$0xff]
    %v709 = vld [vmem:[%s8 + $0x10] sm:$0xff]
    %v710 = vld [vmem:[%s8 + $0x18] sm:$0xff]
    %v711 = vld [vmem:[%s8 + $0x20] sm:$0xff]
    %v712 = vld [vmem:[%s8 + $0x28] sm:$0xff]
    %v713 = vld [vmem:[%s8 + $0x30] sm:$0xff]
    %v714 = vld [vmem:[%s8 + $0x38] sm:$0xff]
    %v715 = vld [vmem:[%s8 + $0x40] sm:$0xff]
    %v716 = vld [vmem:[%s8 + $0x48] sm:$0xff]
    %v717 = vld [vmem:[%s8 + $0x50] sm:$0xff]
    %v718 = vld [vmem:[%s8 + $0x58] sm:$0xff]
    %v719 = vld [vmem:[%s8 + $0x60] sm:$0xff]
    %v720 = vld [vmem:[%s8 + $0x68] sm:$0xff]
    %v721 = vld [vmem:[%s8 + $0x70] sm:$0xff]
    %v722 = vld [vmem:[%s8 + $0x78] sm:$0xff]
    %v724 = vsel %vm490, %v706, 0
    %726 = vmatprep.subr.mxu0 %v708
    %727 = vmatpush1.msra.mxu0 %v707
    %728 = vmatprep.subr.mxu0 %v710
    %729 = vmatpush1.msra.mxu0 %v709
    %730 = vmatprep.subr.mxu0 %v712
    %731 = vmatpush1.msra.mxu0 %v711
    %732 = vmatprep.subr.mxu0 %v714
    %733 = vmatpush1.msra.mxu0 %v713
    %734 = vmatprep.subr.mxu0 %v716
    %735 = vmatpush1.msra.mxu0 %v715
    %736 = vmatprep.subr.mxu0 %v718
    %737 = vmatpush1.msra.mxu0 %v717
    %738 = vmatprep.subr.mxu0 %v720
    %739 = vmatpush1.msra.mxu0 %v719
    %740 = vmatprep.subr.mxu0 %v722
    %741 = vmatpush1.msra.mxu0 %v721
    %742 = vmatprep.subr.mxu0 0.0
    %743 = vmatpush1.msra.mxu0 0.0
    %744 = vmatprep.subr.mxu0 0.0
    %745 = vmatpush1.msra.mxu0 0.0
    %746 = vmatprep.subr.mxu0 0.0
    %747 = vmatpush1.msra.mxu0 0.0
    %748 = vmatprep.subr.mxu0 0.0
    %749 = vmatpush1.msra.mxu0 0.0
    %750 = vmatprep.subr.mxu0 0.0
    %751 = vmatpush1.msra.mxu0 0.0
    %752 = vmatprep.subr.mxu0 0.0
    %753 = vmatpush1.msra.mxu0 0.0
    %754 = vmatprep.subr.mxu0 0.0
    %755 = vmatpush1.msra.mxu0 0.0
    %756 = vmatprep.subr.mxu0 0.0
    %757 = vmatpush1.msra.mxu0 0.0
    %758 = vmatprep.subr.mxu0 0.0
    %759 = vmatpush1.msra.mxu0 0.0
    %760 = vmatprep.subr.mxu0 0.0
    %761 = vmatpush1.msra.mxu0 0.0
    %762 = vmatprep.subr.mxu0 0.0
    %763 = vmatpush1.msra.mxu0 0.0
    %764 = vmatprep.subr.mxu0 0.0
    %765 = vmatpush1.msra.mxu0 0.0
    %766 = vmatprep.subr.mxu0 0.0
    %767 = vmatpush1.msra.mxu0 0.0
    %768 = vmatprep.subr.mxu0 0.0
    %769 = vmatpush1.msra.mxu0 0.0
    %770 = vmatprep.subr.mxu0 0.0
    %771 = vmatpush1.msra.mxu0 0.0
    %772 = vmatprep.subr.mxu0 0.0
    %773 = vmatpush1.msra.mxu0 0.0
    %774 = vmatprep.subr.mxu0 0.0
    %775 = vmatpush1.msra.mxu0 0.0
    %776 = vmatprep.subr.mxu0 0.0
    %777 = vmatpush1.msra.mxu0 0.0
    %778 = vmatprep.subr.mxu0 0.0
    %779 = vmatpush1.msra.mxu0 0.0
    %780 = vmatprep.subr.mxu0 0.0
    %781 = vmatpush1.msra.mxu0 0.0
    %782 = vmatprep.subr.mxu0 0.0
    %783 = vmatpush1.msra.mxu0 0.0
    %784 = vmatprep.subr.mxu0 0.0
    %785 = vmatpush1.msra.mxu0 0.0
    %786 = vmatprep.subr.mxu0 0.0
    %787 = vmatpush1.msra.mxu0 0.0
    %788 = vmatprep.subr.mxu0 0.0
    %789 = vmatpush1.msra.mxu0 0.0
    %790 = vmatprep.mubr.f32.mxu0 0.0
    %791 = vmatmul.mubr.f32.gmra.mrb[0].mxu0 %v724
    %v792 = vpop.f32.mrb[0].mxu0
    %v793 = vadd.f32 0.0, %v792
    %v794 = vpop.f32.mrb[0].mxu0
    %v795 = vadd.f32 0.0, %v794
    %796 = vdwg.mxu0
    %v797 = vld [vmem:[%s9] sm:$0xff]
    %v798 = vld [vmem:[%s9 + $0x8] sm:$0xff]
    %v799 = vld [vmem:[%s9 + $0x10] sm:$0xff]
    %v800 = vld [vmem:[%s9 + $0x18] sm:$0xff]
    %v801 = vld [vmem:[%s9 + $0x20] sm:$0xff]
    %v802 = vld [vmem:[%s9 + $0x28] sm:$0xff]
    %v803 = vld [vmem:[%s9 + $0x30] sm:$0xff]
    %v804 = vld [vmem:[%s9 + $0x38] sm:$0xff]
    %v805 = vld [vmem:[%s9 + $0x40] sm:$0xff]
    %v806 = vld [vmem:[%s9 + $0x48] sm:$0xff]
    %v807 = vld [vmem:[%s9 + $0x50] sm:$0xff]
    %v808 = vld [vmem:[%s9 + $0x58] sm:$0xff]
    %v809 = vld [vmem:[%s9 + $0x60] sm:$0xff]
    %v810 = vld [vmem:[%s9 + $0x68] sm:$0xff]
    %v811 = vld [vmem:[%s9 + $0x70] sm:$0xff]
    %v812 = vld [vmem:[%s9 + $0x78] sm:$0xff]
    %813 = vmatprep.subr.mxu0 %v798
    %814 = vmatpush1.msra.mxu0 %v797
    %815 = vmatprep.subr.mxu0 %v800
    %816 = vmatpush1.msra.mxu0 %v799
    %817 = vmatprep.subr.mxu0 %v802
    %818 = vmatpush1.msra.mxu0 %v801
    %819 = vmatprep.subr.mxu0 %v804
    %820 = vmatpush1.msra.mxu0 %v803
    %821 = vmatprep.subr.mxu0 %v806
    %822 = vmatpush1.msra.mxu0 %v805
    %823 = vmatprep.subr.mxu0 %v808
    %824 = vmatpush1.msra.mxu0 %v807
    %825 = vmatprep.subr.mxu0 %v810
    %826 = vmatpush1.msra.mxu0 %v809
    %827 = vmatprep.subr.mxu0 %v812
    %828 = vmatpush1.msra.mxu0 %v811
    %829 = vmatprep.subr.mxu0 0.0
    %830 = vmatpush1.msra.mxu0 0.0
    %831 = vmatprep.subr.mxu0 0.0
    %832 = vmatpush1.msra.mxu0 0.0
    %833 = vmatprep.subr.mxu0 0.0
    %834 = vmatpush1.msra.mxu0 0.0
    %835 = vmatprep.subr.mxu0 0.0
    %836 = vmatpush1.msra.mxu0 0.0
    %837 = vmatprep.subr.mxu0 0.0
    %838 = vmatpush1.msra.mxu0 0.0
    %839 = vmatprep.subr.mxu0 0.0
    %840 = vmatpush1.msra.mxu0 0.0
    %841 = vmatprep.subr.mxu0 0.0
    %842 = vmatpush1.msra.mxu0 0.0
    %843 = vmatprep.subr.mxu0 0.0
    %844 = vmatpush1.msra.mxu0 0.0
    %845 = vmatprep.subr.mxu0 0.0
    %846 = vmatpush1.msra.mxu0 0.0
    %847 = vmatprep.subr.mxu0 0.0
    %848 = vmatpush1.msra.mxu0 0.0
    %849 = vmatprep.subr.mxu0 0.0
    %850 = vmatpush1.msra.mxu0 0.0
    %851 = vmatprep.subr.mxu0 0.0
    %852 = vmatpush1.msra.mxu0 0.0
    %853 = vmatprep.subr.mxu0 0.0
    %854 = vmatpush1.msra.mxu0 0.0
    %855 = vmatprep.subr.mxu0 0.0
    %856 = vmatpush1.msra.mxu0 0.0
    %857 = vmatprep.subr.mxu0 0.0
    %858 = vmatpush1.msra.mxu0 0.0
    %859 = vmatprep.subr.mxu0 0.0
    %860 = vmatpush1.msra.mxu0 0.0
    %861 = vmatprep.subr.mxu0 0.0
    %862 = vmatpush1.msra.mxu0 0.0
    %863 = vmatprep.subr.mxu0 0.0
    %864 = vmatpush1.msra.mxu0 0.0
    %865 = vmatprep.subr.mxu0 0.0
    %866 = vmatpush1.msra.mxu0 0.0
    %867 = vmatprep.subr.mxu0 0.0
    %868 = vmatpush1.msra.mxu0 0.0
    %869 = vmatprep.subr.mxu0 0.0
    %870 = vmatpush1.msra.mxu0 0.0
    %871 = vmatprep.subr.mxu0 0.0
    %872 = vmatpush1.msra.mxu0 0.0
    %873 = vmatprep.subr.mxu0 0.0
    %874 = vmatpush1.msra.mxu0 0.0
    %875 = vmatprep.subr.mxu0 0.0
    %876 = vmatpush1.msra.mxu0 0.0
    %877 = vmatprep.mubr.f32.mxu0 0.0
    %878 = vmatmul.mubr.f32.gmra.mrb[0].mxu0 %v724
    %v879 = vpop.f32.mrb[0].mxu0
    %v880 = vadd.f32 0.0, %v879
    %v881 = vpop.f32.mrb[0].mxu0
    %v882 = vadd.f32 0.0, %v881
    %883 = vdwg.mxu0
    %v886 = vrot.slane %v880, 1
    %v887 = vrot.slane %v882, 1
    %v890 = vadd.f32 %v793, %v886
    %v891 = vadd.f32 %v795, %v887
    %v892 = vld [vmem:[%s11] sm:$0x3]
    %v894 = vlaneseq
    %v895 = vshrl.u32 %v894, 7
    %v896 = vsub.s32 0, %v895
    %v897 = vrot.slane %v892, %v896
    %v898 = vlaneseq
    %v899 = vshrl.u32 %v898, 7
    %v900 = vsub.s32 1, %v899
    %v901 = vrot.slane %v892, %v900
    %v904 = vadd.f32 %v890, %v897
    %v905 = vadd.f32 %v891, %v901
    %v906 = vld [vmem:[#allocation12] sm:$0xff]
    %v907 = vld [vmem:[#allocation12 + $0x8] sm:$0xff]
    %v908 = vld [vmem:[#allocation12 + $0x10] sm:$0xff]
    %v909 = vld [vmem:[#allocation12 + $0x18] sm:$0xff]
    %v910 = vld [vmem:[#allocation12 + $0x20] sm:$0xff]
    %v911 = vld [vmem:[#allocation12 + $0x28] sm:$0xff]
    %v912 = vld [vmem:[#allocation12 + $0x30] sm:$0xff]
    %v913 = vld [vmem:[#allocation12 + $0x38] sm:$0xff]
    %v914 = vld [vmem:[#allocation12 + $0x40] sm:$0xff]
    %v915 = vld [vmem:[#allocation12 + $0x48] sm:$0xff]
    %v916 = vld [vmem:[#allocation12 + $0x50] sm:$0xff]
    %v917 = vld [vmem:[#allocation12 + $0x58] sm:$0xff]
    %v918 = vld [vmem:[#allocation12 + $0x60] sm:$0xff]
    %v919 = vld [vmem:[#allocation12 + $0x68] sm:$0xff]
    %v920 = vld [vmem:[#allocation12 + $0x70] sm:$0xff]
    %v921 = vld [vmem:[#allocation12 + $0x78] sm:$0xff]
    %v923 = vsel %vm490, 0.0, 0
    %925 = vmatprep.subr.mxu0 %v907
    %926 = vmatpush1.msra.mxu0 %v906
    %927 = vmatprep.subr.mxu0 %v909
    %928 = vmatpush1.msra.mxu0 %v908
    %929 = vmatprep.subr.mxu0 %v911
    %930 = vmatpush1.msra.mxu0 %v910
    %931 = vmatprep.subr.mxu0 %v913
    %932 = vmatpush1.msra.mxu0 %v912
    %933 = vmatprep.subr.mxu0 %v915
    %934 = vmatpush1.msra.mxu0 %v914
    %935 = vmatprep.subr.mxu0 %v917
    %936 = vmatpush1.msra.mxu0 %v916
    %937 = vmatprep.subr.mxu0 %v919
    %938 = vmatpush1.msra.mxu0 %v918
    %939 = vmatprep.subr.mxu0 %v921
    %940 = vmatpush1.msra.mxu0 %v920
    %941 = vmatprep.subr.mxu0 0.0
    %942 = vmatpush1.msra.mxu0 0.0
    %943 = vmatprep.subr.mxu0 0.0
    %944 = vmatpush1.msra.mxu0 0.0
    %945 = vmatprep.subr.mxu0 0.0
    %946 = vmatpush1.msra.mxu0 0.0
    %947 = vmatprep.subr.mxu0 0.0
    %948 = vmatpush1.msra.mxu0 0.0
    %949 = vmatprep.subr.mxu0 0.0
    %950 = vmatpush1.msra.mxu0 0.0
    %951 = vmatprep.subr.mxu0 0.0
    %952 = vmatpush1.msra.mxu0 0.0
    %953 = vmatprep.subr.mxu0 0.0
    %954 = vmatpush1.msra.mxu0 0.0
    %955 = vmatprep.subr.mxu0 0.0
    %956 = vmatpush1.msra.mxu0 0.0
    %957 = vmatprep.subr.mxu0 0.0
    %958 = vmatpush1.msra.mxu0 0.0
    %959 = vmatprep.subr.mxu0 0.0
    %960 = vmatpush1.msra.mxu0 0.0
    %961 = vmatprep.subr.mxu0 0.0
    %962 = vmatpush1.msra.mxu0 0.0
    %963 = vmatprep.subr.mxu0 0.0
    %964 = vmatpush1.msra.mxu0 0.0
    %965 = vmatprep.subr.mxu0 0.0
    %966 = vmatpush1.msra.mxu0 0.0
    %967 = vmatprep.subr.mxu0 0.0
    %968 = vmatpush1.msra.mxu0 0.0
    %969 = vmatprep.subr.mxu0 0.0
    %970 = vmatpush1.msra.mxu0 0.0
    %971 = vmatprep.subr.mxu0 0.0
    %972 = vmatpush1.msra.mxu0 0.0
    %973 = vmatprep.subr.mxu0 0.0
    %974 = vmatpush1.msra.mxu0 0.0
    %975 = vmatprep.subr.mxu0 0.0
    %976 = vmatpush1.msra.mxu0 0.0
    %977 = vmatprep.subr.mxu0 0.0
    %978 = vmatpush1.msra.mxu0 0.0
    %979 = vmatprep.subr.mxu0 0.0
    %980 = vmatpush1.msra.mxu0 0.0
    %981 = vmatprep.subr.mxu0 0.0
    %982 = vmatpush1.msra.mxu0 0.0
    %983 = vmatprep.subr.mxu0 0.0
    %984 = vmatpush1.msra.mxu0 0.0
    %985 = vmatprep.subr.mxu0 0.0
    %986 = vmatpush1.msra.mxu0 0.0
    %987 = vmatprep.subr.mxu0 0.0
    %988 = vmatpush1.msra.mxu0 0.0
    %989 = vmatprep.mubr.f32.mxu0 0.0
    %990 = vmatmul.mubr.f32.gmra.mrb[0].mxu0 %v923
    %v991 = vpop.f32.mrb[0].mxu0
    %v992 = vadd.f32 0.0, %v991
    %v993 = vpop.f32.mrb[0].mxu0
    %v994 = vadd.f32 0.0, %v993
    %995 = vdwg.mxu0
    %v996 = vadd.f32 %v904, %v992
    %v997 = vadd.f32 %v905, %v994
    %v998 = vxor.u32 %v996, 2147483648
    %v999 = vmul.f32 %v998, 1.442695
    %v1000 = vpow.pop %v999
    %v1001 = vadd.f32 %v1000, 1.0
    %v1002 = vrcp.pop %v1001
    %v1003 = vmul.f32 1.0, %v1002
    %v1004 = vtanh.pop %v997
    %v1005 = vxor.u32 %v997, 2147483648
    %v1006 = vmul.f32 %v1005, 1.442695
    %v1007 = vpow.pop %v1006
    %v1008 = vadd.f32 %v1007, 1.0
    %v1009 = vrcp.pop %v1008
    %v1010 = vmul.f32 1.0, %v1009
    %v1011 = vmul.f32 %v1003, 0.0
    %v1012 = vmul.f32 %v1003, %v1004
    %1014 = vrot.lane.b32.xlu0 %v1012, 64
    %v1015 = vpop.permute.xlu0 %1014
    %v1017 = vadd.f32 %v1011, %v1015
    %v1018 = vtanh.pop %v1017
    %v1019 = vmul.f32 %v1010, %v1018
    %1021 = vrot.lane.b32.xlu0 %v1019, 64
    %v1022 = vpop.permute.xlu0 %1021
    %vm1024 = vcmask 253952
    %1025 = vst.msk [vmem:[#allocation5] sm:$0x1] %vm1024, %v1022
    %vm1026 = vcmask 516352
    %1027 = vst.msk [vmem:[#allocation5 + $0x1] sm:$0x1] %vm1026, %v1022
    %v1028 = vrot.slane %v880, 7
    %v1029 = vrot.slane %v882, 7
    %v1032 = vadd.f32 %v793, %v1028
    %v1033 = vadd.f32 %v795, %v1029
    %v1034 = vld [vmem:[%s11] sm:$0x3]
    %v1036 = vlaneseq
    %v1037 = vshrl.u32 %v1036, 7
    %v1038 = vsub.s32 0, %v1037
    %v1039 = vrot.slane %v1034, %v1038
    %v1040 = vlaneseq
    %v1041 = vshrl.u32 %v1040, 7
    %v1042 = vsub.s32 1, %v1041
    %v1043 = vrot.slane %v1034, %v1042
    %v1046 = vadd.f32 %v1032, %v1039
    %v1047 = vadd.f32 %v1033, %v1043
    %v1048 = vld [vmem:[#allocation12] sm:$0xff]
    %v1049 = vld [vmem:[#allocation12 + $0x8] sm:$0xff]
    %v1050 = vld [vmem:[#allocation12 + $0x10] sm:$0xff]
    %v1051 = vld [vmem:[#allocation12 + $0x18] sm:$0xff]
    %v1052 = vld [vmem:[#allocation12 + $0x20] sm:$0xff]
    %v1053 = vld [vmem:[#allocation12 + $0x28] sm:$0xff]
    %v1054 = vld [vmem:[#allocation12 + $0x30] sm:$0xff]
    %v1055 = vld [vmem:[#allocation12 + $0x38] sm:$0xff]
    %v1056 = vld [vmem:[#allocation12 + $0x40] sm:$0xff]
    %v1057 = vld [vmem:[#allocation12 + $0x48] sm:$0xff]
    %v1058 = vld [vmem:[#allocation12 + $0x50] sm:$0xff]
    %v1059 = vld [vmem:[#allocation12 + $0x58] sm:$0xff]
    %v1060 = vld [vmem:[#allocation12 + $0x60] sm:$0xff]
    %v1061 = vld [vmem:[#allocation12 + $0x68] sm:$0xff]
    %v1062 = vld [vmem:[#allocation12 + $0x70] sm:$0xff]
    %v1063 = vld [vmem:[#allocation12 + $0x78] sm:$0xff]
    %v1064 = vsel %vm490, %v1022, 0
    %1066 = vmatprep.subr.mxu0 %v1049
    %1067 = vmatpush1.msra.mxu0 %v1048
    %1068 = vmatprep.subr.mxu0 %v1051
    %1069 = vmatpush1.msra.mxu0 %v1050
    %1070 = vmatprep.subr.mxu0 %v1053
    %1071 = vmatpush1.msra.mxu0 %v1052
    %1072 = vmatprep.subr.mxu0 %v1055
    %1073 = vmatpush1.msra.mxu0 %v1054
    %1074 = vmatprep.subr.mxu0 %v1057
    %1075 = vmatpush1.msra.mxu0 %v1056
    %1076 = vmatprep.subr.mxu0 %v1059
    %1077 = vmatpush1.msra.mxu0 %v1058
    %1078 = vmatprep.subr.mxu0 %v1061
    %1079 = vmatpush1.msra.mxu0 %v1060
    %1080 = vmatprep.subr.mxu0 %v1063
    %1081 = vmatpush1.msra.mxu0 %v1062
    %1082 = vmatprep.subr.mxu0 0.0
    %1083 = vmatpush1.msra.mxu0 0.0
    %1084 = vmatprep.subr.mxu0 0.0
    %1085 = vmatpush1.msra.mxu0 0.0
    %1086 = vmatprep.subr.mxu0 0.0
    %1087 = vmatpush1.msra.mxu0 0.0
    %1088 = vmatprep.subr.mxu0 0.0
    %1089 = vmatpush1.msra.mxu0 0.0
    %1090 = vmatprep.subr.mxu0 0.0
    %1091 = vmatpush1.msra.mxu0 0.0
    %1092 = vmatprep.subr.mxu0 0.0
    %1093 = vmatpush1.msra.mxu0 0.0
    %1094 = vmatprep.subr.mxu0 0.0
    %1095 = vmatpush1.msra.mxu0 0.0
    %1096 = vmatprep.subr.mxu0 0.0
    %1097 = vmatpush1.msra.mxu0 0.0
    %1098 = vmatprep.subr.mxu0 0.0
    %1099 = vmatpush1.msra.mxu0 0.0
    %1100 = vmatprep.subr.mxu0 0.0
    %1101 = vmatpush1.msra.mxu0 0.0
    %1102 = vmatprep.subr.mxu0 0.0
    %1103 = vmatpush1.msra.mxu0 0.0
    %1104 = vmatprep.subr.mxu0 0.0
    %1105 = vmatpush1.msra.mxu0 0.0
    %1106 = vmatprep.subr.mxu0 0.0
    %1107 = vmatpush1.msra.mxu0 0.0
    %1108 = vmatprep.subr.mxu0 0.0
    %1109 = vmatpush1.msra.mxu0 0.0
    %1110 = vmatprep.subr.mxu0 0.0
    %1111 = vmatpush1.msra.mxu0 0.0
    %1112 = vmatprep.subr.mxu0 0.0
    %1113 = vmatpush1.msra.mxu0 0.0
    %1114 = vmatprep.subr.mxu0 0.0
    %1115 = vmatpush1.msra.mxu0 0.0
    %1116 = vmatprep.subr.mxu0 0.0
    %1117 = vmatpush1.msra.mxu0 0.0
    %1118 = vmatprep.subr.mxu0 0.0
    %1119 = vmatpush1.msra.mxu0 0.0
    %1120 = vmatprep.subr.mxu0 0.0
    %1121 = vmatpush1.msra.mxu0 0.0
    %1122 = vmatprep.subr.mxu0 0.0
    %1123 = vmatpush1.msra.mxu0 0.0
    %1124 = vmatprep.subr.mxu0 0.0
    %1125 = vmatpush1.msra.mxu0 0.0
    %1126 = vmatprep.subr.mxu0 0.0
    %1127 = vmatpush1.msra.mxu0 0.0
    %1128 = vmatprep.subr.mxu0 0.0
    %1129 = vmatpush1.msra.mxu0 0.0
    %1130 = vmatprep.mubr.f32.mxu0 0.0
    %1131 = vmatmul.mubr.f32.gmra.mrb[0].mxu0 %v1064
    %v1132 = vpop.f32.mrb[0].mxu0
    %v1133 = vadd.f32 0.0, %v1132
    %v1134 = vpop.f32.mrb[0].mxu0
    %v1135 = vadd.f32 0.0, %v1134
    %1136 = vdwg.mxu0
    %v1139 = vrot.slane %v1133, 7
    %v1140 = vrot.slane %v1135, 7
    %v1143 = vadd.f32 %v1046, %v1139
    %v1144 = vadd.f32 %v1047, %v1140
    %v1145 = vxor.u32 %v1143, 2147483648
    %v1146 = vmul.f32 %v1145, 1.442695
    %v1147 = vpow.pop %v1146
    %v1148 = vadd.f32 %v1147, 1.0
    %v1149 = vrcp.pop %v1148
    %v1150 = vmul.f32 1.0, %v1149
    %v1151 = vtanh.pop %v1144
    %v1152 = vxor.u32 %v1144, 2147483648
    %v1153 = vmul.f32 %v1152, 1.442695
    %v1154 = vpow.pop %v1153
    %v1155 = vadd.f32 %v1154, 1.0
    %v1156 = vrcp.pop %v1155
    %v1157 = vmul.f32 1.0, %v1156
    %v1159 = vrot.slane %v1017, 7
    %v1161 = vmul.f32 %v1150, %v1159
    %v1162 = vmul.f32 %v1150, %v1151
    %1164 = vrot.lane.b32.xlu0 %v1162, 64
    %v1165 = vpop.permute.xlu0 %1164
    %v1167 = vadd.f32 %v1161, %v1165
    %v1168 = vtanh.pop %v1167
    %v1169 = vmul.f32 %v1157, %v1168
    %1171 = vrot.lane.b32.xlu0 %v1169, 64
    %v1172 = vpop.permute.xlu0 %1171
    %vm1174 = vcmask 254977
    %1175 = vst.msk [vmem:[#allocation5] sm:$0x2] %vm1174, %v1172
    %vm1176 = vcmask 517377
    %1177 = vst.msk [vmem:[#allocation5 - $0x1] sm:$0x2] %vm1176, %v1172
    %v1178 = vld [vmem:[#allocation5] sm:$0x3]
    %v1179 = vld [vmem:[#allocation14] sm:$0xff]
    %v1180 = vld [vmem:[#allocation14 + $0x8] sm:$0xff]
    %v1181 = vld [vmem:[#allocation14 + $0x10] sm:$0xff]
    %v1182 = vld [vmem:[#allocation14 + $0x18] sm:$0xff]
    %v1183 = vld [vmem:[#allocation14 + $0x20] sm:$0xff]
    %v1184 = vld [vmem:[#allocation14 + $0x28] sm:$0xff]
    %v1185 = vld [vmem:[#allocation14 + $0x30] sm:$0xff]
    %v1186 = vld [vmem:[#allocation14 + $0x38] sm:$0xff]
    %v1187 = vld [vmem:[#allocation15] sm:$0x1]
    %v1189 = vlaneseq
    %v1190 = vshrl.u32 %v1189, 7
    %v1191 = vsub.s32 0, %v1190
    %v1192 = vrot.slane %v1187, %v1191
    %v1195 = vsel %vm490, %v1178, 0
    %1197 = vmatprep.subr.mxu0 0.0
    %1198 = vmatpush1.msra.mxu0 %v1179
    %1199 = vmatprep.subr.mxu0 0.0
    %1200 = vmatpush1.msra.mxu0 %v1180
    %1201 = vmatprep.subr.mxu0 0.0
    %1202 = vmatpush1.msra.mxu0 %v1181
    %1203 = vmatprep.subr.mxu0 0.0
    %1204 = vmatpush1.msra.mxu0 %v1182
    %1205 = vmatprep.subr.mxu0 0.0
    %1206 = vmatpush1.msra.mxu0 %v1183
    %1207 = vmatprep.subr.mxu0 0.0
    %1208 = vmatpush1.msra.mxu0 %v1184
    %1209 = vmatprep.subr.mxu0 0.0
    %1210 = vmatpush1.msra.mxu0 %v1185
    %1211 = vmatprep.subr.mxu0 0.0
    %1212 = vmatpush1.msra.mxu0 %v1186
    %1213 = vmatprep.subr.mxu0 0.0
    %1214 = vmatpush1.msra.mxu0 0.0
    %1215 = vmatprep.subr.mxu0 0.0
    %1216 = vmatpush1.msra.mxu0 0.0
    %1217 = vmatprep.subr.mxu0 0.0
    %1218 = vmatpush1.msra.mxu0 0.0
    %1219 = vmatprep.subr.mxu0 0.0
    %1220 = vmatpush1.msra.mxu0 0.0
    %1221 = vmatprep.subr.mxu0 0.0
    %1222 = vmatpush1.msra.mxu0 0.0
    %1223 = vmatprep.subr.mxu0 0.0
    %1224 = vmatpush1.msra.mxu0 0.0
    %1225 = vmatprep.subr.mxu0 0.0
    %1226 = vmatpush1.msra.mxu0 0.0
    %1227 = vmatprep.subr.mxu0 0.0
    %1228 = vmatpush1.msra.mxu0 0.0
    %1229 = vmatprep.subr.mxu0 0.0
    %1230 = vmatpush1.msra.mxu0 0.0
    %1231 = vmatprep.subr.mxu0 0.0
    %1232 = vmatpush1.msra.mxu0 0.0
    %1233 = vmatprep.subr.mxu0 0.0
    %1234 = vmatpush1.msra.mxu0 0.0
    %1235 = vmatprep.subr.mxu0 0.0
    %1236 = vmatpush1.msra.mxu0 0.0
    %1237 = vmatprep.subr.mxu0 0.0
    %1238 = vmatpush1.msra.mxu0 0.0
    %1239 = vmatprep.subr.mxu0 0.0
    %1240 = vmatpush1.msra.mxu0 0.0
    %1241 = vmatprep.subr.mxu0 0.0
    %1242 = vmatpush1.msra.mxu0 0.0
    %1243 = vmatprep.subr.mxu0 0.0
    %1244 = vmatpush1.msra.mxu0 0.0
    %1245 = vmatprep.subr.mxu0 0.0
    %1246 = vmatpush1.msra.mxu0 0.0
    %1247 = vmatprep.subr.mxu0 0.0
    %1248 = vmatpush1.msra.mxu0 0.0
    %1249 = vmatprep.subr.mxu0 0.0
    %1250 = vmatpush1.msra.mxu0 0.0
    %1251 = vmatprep.subr.mxu0 0.0
    %1252 = vmatpush1.msra.mxu0 0.0
    %1253 = vmatprep.subr.mxu0 0.0
    %1254 = vmatpush1.msra.mxu0 0.0
    %1255 = vmatprep.subr.mxu0 0.0
    %1256 = vmatpush1.msra.mxu0 0.0
    %1257 = vmatprep.subr.mxu0 0.0
    %1258 = vmatpush1.msra.mxu0 0.0
    %1259 = vmatprep.subr.mxu0 0.0
    %1260 = vmatpush1.msra.mxu0 0.0
    %1261 = vmatprep.mubr.f32.mxu0 0.0
    %1262 = vmatmul.mubr.f32.gmra.mrb[0].mxu0 %v1195
    %v1263 = vpop.f32.mrb[0].mxu0
    %v1264 = vadd.f32 %v1192, %v1263
    %v1265 = vpop.f32.mrb[0].mxu0
    %1266 = vdwg.mxu0
    %v1267 = vmax.f32 %v1264, 0.0
    %v1268 = vld [vmem:[%s14] sm:$0xff]
    %v1269 = vld [vmem:[%s14 + $0x8] sm:$0xff]
    %v1270 = vld [vmem:[%s14 + $0x10] sm:$0xff]
    %v1271 = vld [vmem:[%s14 + $0x18] sm:$0xff]
    %v1272 = vld [vmem:[%s14 + $0x20] sm:$0xff]
    %v1273 = vld [vmem:[%s14 + $0x28] sm:$0xff]
    %v1274 = vld [vmem:[%s14 + $0x30] sm:$0xff]
    %v1275 = vld [vmem:[%s14 + $0x38] sm:$0xff]
    %v1276 = vld [vmem:[%s14 + $0x40] sm:$0xff]
    %v1277 = vld [vmem:[%s14 + $0x48] sm:$0xff]
    %v1278 = vld [vmem:[%s14 + $0x50] sm:$0xff]
    %v1279 = vld [vmem:[%s14 + $0x58] sm:$0xff]
    %v1280 = vld [vmem:[%s14 + $0x60] sm:$0xff]
    %v1281 = vld [vmem:[%s14 + $0x68] sm:$0xff]
    %v1282 = vld [vmem:[%s14 + $0x70] sm:$0xff]
    %v1283 = vld [vmem:[%s14 + $0x78] sm:$0xff]
    %v1284 = vld [vmem:[#allocation6] sm:$0x1]
    %v1286 = vlaneseq
    %v1287 = vshrl.u32 %v1286, 7
    %v1288 = vsub.s32 0, %v1287
    %v1289 = vrot.slane %v1284, %v1288
    %1291 = vmatprep.subr.mxu0 0.0
    %1292 = vmatpush1.msra.mxu0 %v1268
    %1293 = vmatprep.subr.mxu0 0.0
    %1294 = vmatpush1.msra.mxu0 %v1269
    %1295 = vmatprep.subr.mxu0 0.0
    %1296 = vmatpush1.msra.mxu0 %v1270
    %1297 = vmatprep.subr.mxu0 0.0
    %1298 = vmatpush1.msra.mxu0 %v1271
    %1299 = vmatprep.subr.mxu0 0.0
    %1300 = vmatpush1.msra.mxu0 %v1272
    %1301 = vmatprep.subr.mxu0 0.0
    %1302 = vmatpush1.msra.mxu0 %v1273
    %1303 = vmatprep.subr.mxu0 0.0
    %1304 = vmatpush1.msra.mxu0 %v1274
    %1305 = vmatprep.subr.mxu0 0.0
    %1306 = vmatpush1.msra.mxu0 %v1275
    %1307 = vmatprep.subr.mxu0 0.0
    %1308 = vmatpush1.msra.mxu0 %v1276
    %1309 = vmatprep.subr.mxu0 0.0
    %1310 = vmatpush1.msra.mxu0 %v1277
    %1311 = vmatprep.subr.mxu0 0.0
    %1312 = vmatpush1.msra.mxu0 %v1278
    %1313 = vmatprep.subr.mxu0 0.0
    %1314 = vmatpush1.msra.mxu0 %v1279
    %1315 = vmatprep.subr.mxu0 0.0
    %1316 = vmatpush1.msra.mxu0 %v1280
    %1317 = vmatprep.subr.mxu0 0.0
    %1318 = vmatpush1.msra.mxu0 %v1281
    %1319 = vmatprep.subr.mxu0 0.0
    %1320 = vmatpush1.msra.mxu0 %v1282
    %1321 = vmatprep.subr.mxu0 0.0
    %1322 = vmatpush1.msra.mxu0 %v1283
    %1323 = vmatprep.subr.mxu0 0.0
    %1324 = vmatpush1.msra.mxu0 0.0
    %1325 = vmatprep.subr.mxu0 0.0
    %1326 = vmatpush1.msra.mxu0 0.0
    %1327 = vmatprep.subr.mxu0 0.0
    %1328 = vmatpush1.msra.mxu0 0.0
    %1329 = vmatprep.subr.mxu0 0.0
    %1330 = vmatpush1.msra.mxu0 0.0
    %1331 = vmatprep.subr.mxu0 0.0
    %1332 = vmatpush1.msra.mxu0 0.0
    %1333 = vmatprep.subr.mxu0 0.0
    %1334 = vmatpush1.msra.mxu0 0.0
    %1335 = vmatprep.subr.mxu0 0.0
    %1336 = vmatpush1.msra.mxu0 0.0
    %1337 = vmatprep.subr.mxu0 0.0
    %1338 = vmatpush1.msra.mxu0 0.0
    %1339 = vmatprep.subr.mxu0 0.0
    %1340 = vmatpush1.msra.mxu0 0.0
    %1341 = vmatprep.subr.mxu0 0.0
    %1342 = vmatpush1.msra.mxu0 0.0
    %1343 = vmatprep.subr.mxu0 0.0
    %1344 = vmatpush1.msra.mxu0 0.0
    %1345 = vmatprep.subr.mxu0 0.0
    %1346 = vmatpush1.msra.mxu0 0.0
    %1347 = vmatprep.subr.mxu0 0.0
    %1348 = vmatpush1.msra.mxu0 0.0
    %1349 = vmatprep.subr.mxu0 0.0
    %1350 = vmatpush1.msra.mxu0 0.0
    %1351 = vmatprep.subr.mxu0 0.0
    %1352 = vmatpush1.msra.mxu0 0.0
    %1353 = vmatprep.subr.mxu0 0.0
    %1354 = vmatpush1.msra.mxu0 0.0
    %1355 = vmatprep.mubr.f32.mxu0 0.0
    %1356 = vmatmul.mubr.f32.gmra.mrb[0].mxu0 %v1267
    %v1357 = vpop.f32.mrb[0].mxu0
    %v1358 = vadd.f32 %v1289, %v1357
    %v1359 = vpop.f32.mrb[0].mxu0
    %1360 = vdwg.mxu0
    %vm1361 = vcmask 1024
    %1362 = vst.msk [vmem:[%s16] sm:$0x3] %vm1361, %v1358
    // Predicated region
    $region90: #{cnn_lstm_forward.1} parent=1 // pred_check
      _
    $region91: #{cnn_lstm_forward.1} parent=1 // pred_check_branch
      %1364 = sbr.rel (0) target = $region93
    $region92: #{cnn_lstm_forward.1} parent=1 // pred_region
      _
    $region93: #{cnn_lstm_forward.1} parent=1 // pred_fallthru
      _
    // Predicated region
    $region94: #{cnn_lstm_forward.1} parent=1 // pred_check
      _
    $region95: #{cnn_lstm_forward.1} parent=1 // pred_check_branch
      %1366 = sbr.rel (0) target = $region97
    $region96: #{cnn_lstm_forward.1} parent=1 // pred_region
      _
    $region97: #{cnn_lstm_forward.1} parent=1 // pred_fallthru
      _
    %1367 = vsyncpa [#allocation8], 1
    %1368 = vsyncpa [#allocation10], 1
    %1369 = vsyncpa [#allocation13], 1
    %1370 = vsyncpa [#allocation16], 1

</llo_original>
